<compile_context>
chip_gen: v7x
topology: tpu7x:2x2x1
jax: 0.10.0
libtpu: 0.0.40
codegen_flags: <defaults>
</compile_context>

<pallas_src>
import math

import numpy as np
import jax
import jax.numpy as jnp
from jax.experimental import pallas as pl
from jax.experimental.pallas import tpu as pltpu


# ----------------------------------------------------------------------------
# In-kernel building blocks
# ----------------------------------------------------------------------------
def _conv_layer(xv, wk_ref, b_ref):
    """One 3x3 / stride-2 / pad-1 conv + bias + ReLU as 3 batched tap GEMMs.

    xv:     (Hin, TB, Win*Cin) activations, lane index = w*Cin + c.
    wk_ref: (3, Win*Cin, Wout*Cout) per-kh width-conv band matrices
            (width zero-padding folded in).
    b_ref:  (1, Wout*Cout) bias broadcast over width.
    Returns (Hout, TB, Wout*Cout) with Hout = Hin // 2.
    """
    h_in, tb, wc = xv.shape
    h_out = h_in // 2
    n_out = wk_ref.shape[2]

    # Group input rows (2*ho, 2*ho+1) into one slab of 2*TB sublanes; the
    # reshape is layout-preserving (TB is a multiple of 8) and the slices
    # below are tile-aligned sublane selections.
    xp = xv.reshape(h_out, 2 * tb, wc)
    x_even = xp[:, :tb, :]     # input row 2*ho      (center tap, kh = 1)
    x_odd = xp[:, tb:, :]      # input row 2*ho + 1  (bottom tap, kh = 2)

    def tap(rows, w):
        r = rows.shape[0]
        p = jnp.dot(rows.reshape(r * tb, wc), w,
                    preferred_element_type=jnp.float32)
        return p.reshape(r, tb, n_out)

    acc = tap(x_even, wk_ref[1]) + tap(x_odd, wk_ref[2])
    # Top tap (kh = 0) reads input row 2*ho - 1: zero (height padding) for
    # ho == 0, otherwise x_odd shifted down by one output row.
    top = tap(x_odd[: h_out - 1], wk_ref[0])
    acc = acc + jnp.concatenate(
        [jnp.zeros((1, tb, n_out), jnp.float32), top], axis=0)
    return jnp.maximum(acc + b_ref[...], 0.0)


def _fused_cnn_kernel(x_ref, w1_ref, b1_ref, w2_ref, b2_ref, w3_ref, b3_ref,
                      fcw_ref, fcb_ref, o_ref):
    # x_ref: (32, TB, 96) -- NHWC with (W, C) fused in the lane dim.
    h1 = _conv_layer(x_ref[...], w1_ref, b1_ref)     # (16, TB, 64)
    h2 = _conv_layer(h1, w2_ref, b2_ref)             # ( 8, TB, 32)
    h3 = _conv_layer(h2, w3_ref, b3_ref)             # ( 4, TB, 16)

    # Classifier: logits = fc_b + sum_h h3[h] @ fcw[h]   (no layout change).
    acc = None
    for h in range(fcw_ref.shape[0]):
        p = jnp.dot(h3[h], fcw_ref[h], preferred_element_type=jnp.float32)
        acc = p if acc is None else acc + p
    o_ref[...] = (acc + fcb_ref[...]).astype(o_ref.dtype)


# ----------------------------------------------------------------------------
# Weight-side transforms (tiny; pure functions of the parameters)
# ----------------------------------------------------------------------------
def _band_mats(w, width, stride=2, pad=1):
    """PyTorch conv weight (O, C, KH, KW) -> (KH, W*C, Wo*O) width-conv mats.

    mats[kh, iw*C + c, wo*O + o] = w[o, c, kh, iw - stride*wo + pad]
    when that kw is in range, else 0 (width zero-padding folded in).
    """
    O, C, KH, KW = w.shape
    Wo = (width + 2 * pad - KW) // stride + 1
    sel = np.zeros((KW, width, Wo), np.float32)
    for kw in range(KW):
        for wo in range(Wo):
            iw = stride * wo - pad + kw
            if 0 <= iw < width:
                sel[kw, iw, wo] = 1.0
    mats = jnp.einsum("kiu,ocjk->jicuo", sel, w.astype(jnp.float32))
    return mats.reshape(KH, width * C, Wo * O)


def _round_up(x, m):
    return ((x + m - 1) // m) * m


# ----------------------------------------------------------------------------
# Full forward pass (single pallas_call)
# ----------------------------------------------------------------------------
def simple_cnn_forward(params, x, *, tb=None):
    B, C, H, W = x.shape                              # (B, 3, 32, 32)
    if tb is None:
        tb = min(64, _round_up(max(B, 1), 8))         # batch tile, multiple of 8
    b_pad = _round_up(B, tb)

    # Boundary layout change only: NCHW -> (H, B, W*C), lane index = w*C + c.
    xl = jnp.transpose(x, (2, 0, 3, 1)).reshape(H, B, W * C).astype(jnp.float32)
    if b_pad != B:
        xl = jnp.pad(xl, ((0, 0), (0, b_pad - B), (0, 0)))

    # Weight transforms (tiny; could be precomputed once outside a train step).
    w1 = _band_mats(params["conv1_w"], W)             # (3, 96, 64)
    w2 = _band_mats(params["conv2_w"], W // 2)        # (3, 64, 32)
    w3 = _band_mats(params["conv3_w"], W // 4)        # (3, 32, 16)
    b1 = jnp.tile(params["conv1_b"], W // 2)[None].astype(jnp.float32)   # (1, 64)
    b2 = jnp.tile(params["conv2_b"], W // 4)[None].astype(jnp.float32)   # (1, 32)
    b3 = jnp.tile(params["conv3_b"], W // 8)[None].astype(jnp.float32)   # (1, 16)

    # FC weight: PyTorch flattens NCHW (c, h, w); our feature rows are
    # (h, lane = w*O3 + c), so permute the weight columns accordingly.
    O3 = params["conv3_w"].shape[0]                   # 4
    Hf = W // 8                                       # 4 (= Wf)
    fcw = params["fc_w"].reshape(-1, O3, Hf, Hf)      # (10, c, h, w)
    fcw = fcw.transpose(2, 3, 1, 0).reshape(Hf, Hf * O3, -1).astype(jnp.float32)
    fcb = params["fc_b"][None].astype(jnp.float32)    # (1, 10)
    n_cls = fcb.shape[1]

    nsteps = b_pad // tb

    # Advisory cost estimate (flops of the batched tap GEMMs).
    def _layer_flops(h_out, wc_in, n_out):
        rows = tb * (h_out + h_out + (h_out - 1))
        return 2 * rows * wc_in * n_out
    flops_step = (_layer_flops(H // 2, w1.shape[1], w1.shape[2])
                  + _layer_flops(H // 4, w2.shape[1], w2.shape[2])
                  + _layer_flops(H // 8, w3.shape[1], w3.shape[2])
                  + 2 * tb * fcw.shape[0] * fcw.shape[1] * fcw.shape[2])
    weight_bytes = 4 * int(w1.size + b1.size + w2.size + b2.size + w3.size
                           + b3.size + fcw.size + fcb.size)
    bytes_step = 4 * (tb * H * W * C + tb * n_cls)
    cost = pl.CostEstimate(flops=int(flops_step) * nsteps,
                           transcendentals=0,
                           bytes_accessed=bytes_step * nsteps + weight_bytes)

    out = pl.pallas_call(
        _fused_cnn_kernel,
        out_shape=jax.ShapeDtypeStruct((b_pad, n_cls), jnp.float32),
        grid=(nsteps,),
        in_specs=[
            pl.BlockSpec((H, tb, W * C), lambda i: (0, i, 0)),
            pl.BlockSpec(w1.shape, lambda i: (0, 0, 0)),
            pl.BlockSpec(b1.shape, lambda i: (0, 0)),
            pl.BlockSpec(w2.shape, lambda i: (0, 0, 0)),
            pl.BlockSpec(b2.shape, lambda i: (0, 0)),
            pl.BlockSpec(w3.shape, lambda i: (0, 0, 0)),
            pl.BlockSpec(b3.shape, lambda i: (0, 0)),
            pl.BlockSpec(fcw.shape, lambda i: (0, 0, 0)),
            pl.BlockSpec(fcb.shape, lambda i: (0, 0)),
        ],
        out_specs=pl.BlockSpec((tb, n_cls), lambda i: (i, 0)),
        compiler_params=pltpu.CompilerParams(
            dimension_semantics=("parallel",)),
        cost_estimate=cost,
    )(xl, w1, b1, w2, b2, w3, b3, fcw, fcb)
    return out[:B]


# ----------------------------------------------------------------------------
# Parameter init (deterministic, PyTorch-style kaiming-uniform bounds)
# ----------------------------------------------------------------------------
def init_params(key):
    def _uniform(k, shape, fan_in):
        bound = 1.0 / math.sqrt(fan_in)
        return jax.random.uniform(k, shape, jnp.float32, -bound, bound)

    keys = jax.random.split(key, 8)
    return {
        "conv1_w": _uniform(keys[0], (4, 3, 3, 3), 3 * 3 * 3),
        "conv1_b": _uniform(keys[1], (4,), 3 * 3 * 3),
        "conv2_w": _uniform(keys[2], (4, 4, 3, 3), 4 * 3 * 3),
        "conv2_b": _uniform(keys[3], (4,), 4 * 3 * 3),
        "conv3_w": _uniform(keys[4], (4, 4, 3, 3), 4 * 3 * 3),
        "conv3_b": _uniform(keys[5], (4,), 4 * 3 * 3),
        "fc_w": _uniform(keys[6], (10, 64), 64),      # PyTorch Linear: (out, in)
        "fc_b": _uniform(keys[7], (10,), 64),
    }


# ----------------------------------------------------------------------------
# Pure-JAX reference (for numerical verification of the fused kernel)
# ----------------------------------------------------------------------------
def _reference_forward(params, x):
    def conv(h, w, b):
        y = jax.lax.conv_general_dilated(
            h, w, window_strides=(2, 2), padding=((1, 1), (1, 1)),
            dimension_numbers=("NCHW", "OIHW", "NCHW"),
            precision=jax.lax.Precision.HIGHEST)
        return jax.nn.relu(y + b[None, :, None, None])

    h = conv(x, params["conv1_w"], params["conv1_b"])
    h = conv(h, params["conv2_w"], params["conv2_b"])
    h = conv(h, params["conv3_w"], params["conv3_b"])
    h = h.reshape(h.shape[0], -1)
    return jnp.dot(h, params["fc_w"].T,
                   precision=jax.lax.Precision.HIGHEST) + params["fc_b"]


if __name__ == "__main__":
    key = jax.random.PRNGKey(0)
    pkey, xkey = jax.random.split(key)
    params = init_params(pkey)
    # CIFAR-shaped input: NCHW (B, 3, 32, 32); 32x32 is required so the
    # flattened feature size matches Linear(4*4*4, 10).
    x = jax.random.normal(xkey, (2, 3, 32, 32), jnp.float32)

    logits = jax.jit(simple_cnn_forward)(params, x)
    logits = jax.block_until_ready(logits)
    assert logits.shape == (2, 10), logits.shape
    assert bool(jnp.all(jnp.isfinite(logits)))

    ref = _reference_forward(params, x)
    err = float(jnp.max(jnp.abs(logits - ref)))
    assert jnp.allclose(logits, ref, rtol=1e-2, atol=1e-2), err

    print("KERNEL_OK")
</pallas_src>

<mosaic_0001>
module attributes {stable_mosaic.version = 11 : i64} {
  func.func @_fused_cnn_kernel(%arg0: i32, %arg1: memref<32x8x96xf32, #tpu.memory_space<vmem>>, %arg2: memref<3x96x64xf32, #tpu.memory_space<vmem>>, %arg3: memref<1x64xf32, #tpu.memory_space<vmem>>, %arg4: memref<3x64x32xf32, #tpu.memory_space<vmem>>, %arg5: memref<1x32xf32, #tpu.memory_space<vmem>>, %arg6: memref<3x32x16xf32, #tpu.memory_space<vmem>>, %arg7: memref<1x16xf32, #tpu.memory_space<vmem>>, %arg8: memref<4x16x10xf32, #tpu.memory_space<vmem>>, %arg9: memref<1x10xf32, #tpu.memory_space<vmem>>, %arg10: memref<8x10xf32, #tpu.memory_space<vmem>>) attributes {dimension_semantics = [#tpu.dimension_semantics<parallel>], iteration_bounds = array<i64: 1>, scalar_prefetch = 0 : i64, scratch_operands = 0 : i64, tpu.core_type = #tpu.core_type<tc>, window_params = [{transform_indices = @transform_0, window_bounds = array<i64: 32, 8, 96>}, {pipeline_mode = #tpu.pipeline_mode<synchronous>, transform_indices = @transform_1, window_bounds = array<i64: 3, 96, 64>}, {pipeline_mode = #tpu.pipeline_mode<synchronous>, transform_indices = @transform_2, window_bounds = array<i64: 1, 64>}, {pipeline_mode = #tpu.pipeline_mode<synchronous>, transform_indices = @transform_3, window_bounds = array<i64: 3, 64, 32>}, {pipeline_mode = #tpu.pipeline_mode<synchronous>, transform_indices = @transform_4, window_bounds = array<i64: 1, 32>}, {pipeline_mode = #tpu.pipeline_mode<synchronous>, transform_indices = @transform_5, window_bounds = array<i64: 3, 32, 16>}, {pipeline_mode = #tpu.pipeline_mode<synchronous>, transform_indices = @transform_6, window_bounds = array<i64: 1, 16>}, {pipeline_mode = #tpu.pipeline_mode<synchronous>, transform_indices = @transform_7, window_bounds = array<i64: 4, 16, 10>}, {pipeline_mode = #tpu.pipeline_mode<synchronous>, transform_indices = @transform_8, window_bounds = array<i64: 1, 10>}, {transform_indices = @transform_9, window_bounds = array<i64: 8, 10>}]} {
    %c0 = arith.constant 0 : index
    %c0_0 = arith.constant 0 : index
    %c0_1 = arith.constant 0 : index
    %0 = vector.load %arg1[%c0, %c0_0, %c0_1] : memref<32x8x96xf32, #tpu.memory_space<vmem>>, vector<32x8x96xf32>
    %1 = vector.shape_cast %0 : vector<32x8x96xf32> to vector<16x16x96xf32>
    %2 = vector.extract_strided_slice %1 {offsets = [0, 0, 0], sizes = [16, 8, 96], strides = [1, 1, 1]} : vector<16x16x96xf32> to vector<16x8x96xf32>
    %3 = vector.extract_strided_slice %1 {offsets = [0, 8, 0], sizes = [16, 8, 96], strides = [1, 1, 1]} : vector<16x16x96xf32> to vector<16x8x96xf32>
    %c1 = arith.constant 1 : index
    %c0_2 = arith.constant 0 : index
    %c0_3 = arith.constant 0 : index
    %4 = vector.load %arg2[%c1, %c0_2, %c0_3] : memref<3x96x64xf32, #tpu.memory_space<vmem>>, vector<1x96x64xf32>
    %5 = vector.shape_cast %4 : vector<1x96x64xf32> to vector<96x64xf32>
    %6 = vector.shape_cast %2 : vector<16x8x96xf32> to vector<128x96xf32>
    %cst = arith.constant dense<0.000000e+00> : vector<128x64xf32>
    %7 = tpu.matmul %6, %5, %cst {dimension_numbers = #tpu.dot_dimension_numbers<[1], [0], [0], [1], [0, 0, 1, 1], [], []>} : vector<128x96xf32>, vector<96x64xf32>, vector<128x64xf32> -> vector<128x64xf32>
    %8 = vector.shape_cast %7 : vector<128x64xf32> to vector<16x8x64xf32>
    %c2 = arith.constant 2 : index
    %c0_4 = arith.constant 0 : index
    %c0_5 = arith.constant 0 : index
    %9 = vector.load %arg2[%c2, %c0_4, %c0_5] : memref<3x96x64xf32, #tpu.memory_space<vmem>>, vector<1x96x64xf32>
    %10 = vector.shape_cast %9 : vector<1x96x64xf32> to vector<96x64xf32>
    %11 = vector.shape_cast %3 : vector<16x8x96xf32> to vector<128x96xf32>
    %cst_6 = arith.constant dense<0.000000e+00> : vector<128x64xf32>
    %12 = tpu.matmul %11, %10, %cst_6 {dimension_numbers = #tpu.dot_dimension_numbers<[1], [0], [0], [1], [0, 0, 1, 1], [], []>} : vector<128x96xf32>, vector<96x64xf32>, vector<128x64xf32> -> vector<128x64xf32>
    %13 = vector.shape_cast %12 : vector<128x64xf32> to vector<16x8x64xf32>
    %14 = arith.addf %8, %13 : vector<16x8x64xf32>
    %15 = vector.extract_strided_slice %3 {offsets = [0, 0, 0], sizes = [15, 8, 96], strides = [1, 1, 1]} : vector<16x8x96xf32> to vector<15x8x96xf32>
    %c0_7 = arith.constant 0 : index
    %c0_8 = arith.constant 0 : index
    %c0_9 = arith.constant 0 : index
    %16 = vector.load %arg2[%c0_7, %c0_8, %c0_9] : memref<3x96x64xf32, #tpu.memory_space<vmem>>, vector<1x96x64xf32>
    %17 = vector.shape_cast %16 : vector<1x96x64xf32> to vector<96x64xf32>
    %18 = vector.shape_cast %15 : vector<15x8x96xf32> to vector<120x96xf32>
    %cst_10 = arith.constant dense<0.000000e+00> : vector<120x64xf32>
    %19 = tpu.matmul %18, %17, %cst_10 {dimension_numbers = #tpu.dot_dimension_numbers<[1], [0], [0], [1], [0, 0, 1, 1], [], []>} : vector<120x96xf32>, vector<96x64xf32>, vector<120x64xf32> -> vector<120x64xf32>
    %20 = vector.shape_cast %19 : vector<120x64xf32> to vector<15x8x64xf32>
    %cst_11 = arith.constant 0.000000e+00 : f32
    %21 = vector.broadcast %cst_11 : f32 to vector<1x8x64xf32>
    %22 = tpu.concatenate %21, %20 in 0 : vector<1x8x64xf32>, vector<15x8x64xf32> -> vector<16x8x64xf32>
    %23 = arith.addf %14, %22 : vector<16x8x64xf32>
    %c0_12 = arith.constant 0 : index
    %c0_13 = arith.constant 0 : index
    %24 = vector.load %arg3[%c0_12, %c0_13] : memref<1x64xf32, #tpu.memory_space<vmem>>, vector<1x64xf32>
    %25 = vector.shape_cast %24 : vector<1x64xf32> to vector<1x1x64xf32>
    %26 = vector.broadcast %25 : vector<1x1x64xf32> to vector<16x8x64xf32>
    %27 = arith.addf %23, %26 : vector<16x8x64xf32>
    %cst_14 = arith.constant 0.000000e+00 : f32
    %28 = vector.broadcast %cst_14 : f32 to vector<16x8x64xf32>
    %29 = arith.maximumf %27, %28 : vector<16x8x64xf32>
    %30 = vector.shape_cast %29 : vector<16x8x64xf32> to vector<8x16x64xf32>
    %31 = vector.extract_strided_slice %30 {offsets = [0, 0, 0], sizes = [8, 8, 64], strides = [1, 1, 1]} : vector<8x16x64xf32> to vector<8x8x64xf32>
    %32 = vector.extract_strided_slice %30 {offsets = [0, 8, 0], sizes = [8, 8, 64], strides = [1, 1, 1]} : vector<8x16x64xf32> to vector<8x8x64xf32>
    %c1_15 = arith.constant 1 : index
    %c0_16 = arith.constant 0 : index
    %c0_17 = arith.constant 0 : index
    %33 = vector.load %arg4[%c1_15, %c0_16, %c0_17] : memref<3x64x32xf32, #tpu.memory_space<vmem>>, vector<1x64x32xf32>
    %34 = vector.shape_cast %33 : vector<1x64x32xf32> to vector<64x32xf32>
    %35 = vector.shape_cast %31 : vector<8x8x64xf32> to vector<64x64xf32>
    %cst_18 = arith.constant dense<0.000000e+00> : vector<64x32xf32>
    %36 = tpu.matmul %35, %34, %cst_18 {dimension_numbers = #tpu.dot_dimension_numbers<[1], [0], [0], [1], [0, 0, 1, 1], [], []>} : vector<64x64xf32>, vector<64x32xf32>, vector<64x32xf32> -> vector<64x32xf32>
    %37 = vector.shape_cast %36 : vector<64x32xf32> to vector<8x8x32xf32>
    %c2_19 = arith.constant 2 : index
    %c0_20 = arith.constant 0 : index
    %c0_21 = arith.constant 0 : index
    %38 = vector.load %arg4[%c2_19, %c0_20, %c0_21] : memref<3x64x32xf32, #tpu.memory_space<vmem>>, vector<1x64x32xf32>
    %39 = vector.shape_cast %38 : vector<1x64x32xf32> to vector<64x32xf32>
    %40 = vector.shape_cast %32 : vector<8x8x64xf32> to vector<64x64xf32>
    %cst_22 = arith.constant dense<0.000000e+00> : vector<64x32xf32>
    %41 = tpu.matmul %40, %39, %cst_22 {dimension_numbers = #tpu.dot_dimension_numbers<[1], [0], [0], [1], [0, 0, 1, 1], [], []>} : vector<64x64xf32>, vector<64x32xf32>, vector<64x32xf32> -> vector<64x32xf32>
    %42 = vector.shape_cast %41 : vector<64x32xf32> to vector<8x8x32xf32>
    %43 = arith.addf %37, %42 : vector<8x8x32xf32>
    %44 = vector.extract_strided_slice %32 {offsets = [0, 0, 0], sizes = [7, 8, 64], strides = [1, 1, 1]} : vector<8x8x64xf32> to vector<7x8x64xf32>
    %c0_23 = arith.constant 0 : index
    %c0_24 = arith.constant 0 : index
    %c0_25 = arith.constant 0 : index
    %45 = vector.load %arg4[%c0_23, %c0_24, %c0_25] : memref<3x64x32xf32, #tpu.memory_space<vmem>>, vector<1x64x32xf32>
    %46 = vector.shape_cast %45 : vector<1x64x32xf32> to vector<64x32xf32>
    %47 = vector.shape_cast %44 : vector<7x8x64xf32> to vector<56x64xf32>
    %cst_26 = arith.constant dense<0.000000e+00> : vector<56x32xf32>
    %48 = tpu.matmul %47, %46, %cst_26 {dimension_numbers = #tpu.dot_dimension_numbers<[1], [0], [0], [1], [0, 0, 1, 1], [], []>} : vector<56x64xf32>, vector<64x32xf32>, vector<56x32xf32> -> vector<56x32xf32>
    %49 = vector.shape_cast %48 : vector<56x32xf32> to vector<7x8x32xf32>
    %cst_27 = arith.constant 0.000000e+00 : f32
    %50 = vector.broadcast %cst_27 : f32 to vector<1x8x32xf32>
    %51 = tpu.concatenate %50, %49 in 0 : vector<1x8x32xf32>, vector<7x8x32xf32> -> vector<8x8x32xf32>
    %52 = arith.addf %43, %51 : vector<8x8x32xf32>
    %c0_28 = arith.constant 0 : index
    %c0_29 = arith.constant 0 : index
    %53 = vector.load %arg5[%c0_28, %c0_29] : memref<1x32xf32, #tpu.memory_space<vmem>>, vector<1x32xf32>
    %54 = vector.shape_cast %53 : vector<1x32xf32> to vector<1x1x32xf32>
    %55 = vector.broadcast %54 : vector<1x1x32xf32> to vector<8x8x32xf32>
    %56 = arith.addf %52, %55 : vector<8x8x32xf32>
    %cst_30 = arith.constant 0.000000e+00 : f32
    %57 = vector.broadcast %cst_30 : f32 to vector<8x8x32xf32>
    %58 = arith.maximumf %56, %57 : vector<8x8x32xf32>
    %59 = vector.shape_cast %58 : vector<8x8x32xf32> to vector<4x16x32xf32>
    %60 = vector.extract_strided_slice %59 {offsets = [0, 0, 0], sizes = [4, 8, 32], strides = [1, 1, 1]} : vector<4x16x32xf32> to vector<4x8x32xf32>
    %61 = vector.extract_strided_slice %59 {offsets = [0, 8, 0], sizes = [4, 8, 32], strides = [1, 1, 1]} : vector<4x16x32xf32> to vector<4x8x32xf32>
    %c1_31 = arith.constant 1 : index
    %c0_32 = arith.constant 0 : index
    %c0_33 = arith.constant 0 : index
    %62 = vector.load %arg6[%c1_31, %c0_32, %c0_33] : memref<3x32x16xf32, #tpu.memory_space<vmem>>, vector<1x32x16xf32>
    %63 = vector.shape_cast %62 : vector<1x32x16xf32> to vector<32x16xf32>
    %64 = vector.shape_cast %60 : vector<4x8x32xf32> to vector<32x32xf32>
    %cst_34 = arith.constant dense<0.000000e+00> : vector<32x16xf32>
    %65 = tpu.matmul %64, %63, %cst_34 {dimension_numbers = #tpu.dot_dimension_numbers<[1], [0], [0], [1], [0, 0, 1, 1], [], []>} : vector<32x32xf32>, vector<32x16xf32>, vector<32x16xf32> -> vector<32x16xf32>
    %66 = vector.shape_cast %65 : vector<32x16xf32> to vector<4x8x16xf32>
    %c2_35 = arith.constant 2 : index
    %c0_36 = arith.constant 0 : index
    %c0_37 = arith.constant 0 : index
    %67 = vector.load %arg6[%c2_35, %c0_36, %c0_37] : memref<3x32x16xf32, #tpu.memory_space<vmem>>, vector<1x32x16xf32>
    %68 = vector.shape_cast %67 : vector<1x32x16xf32> to vector<32x16xf32>
    %69 = vector.shape_cast %61 : vector<4x8x32xf32> to vector<32x32xf32>
    %cst_38 = arith.constant dense<0.000000e+00> : vector<32x16xf32>
    %70 = tpu.matmul %69, %68, %cst_38 {dimension_numbers = #tpu.dot_dimension_numbers<[1], [0], [0], [1], [0, 0, 1, 1], [], []>} : vector<32x32xf32>, vector<32x16xf32>, vector<32x16xf32> -> vector<32x16xf32>
    %71 = vector.shape_cast %70 : vector<32x16xf32> to vector<4x8x16xf32>
    %72 = arith.addf %66, %71 : vector<4x8x16xf32>
    %73 = vector.extract_strided_slice %61 {offsets = [0, 0, 0], sizes = [3, 8, 32], strides = [1, 1, 1]} : vector<4x8x32xf32> to vector<3x8x32xf32>
    %c0_39 = arith.constant 0 : index
    %c0_40 = arith.constant 0 : index
    %c0_41 = arith.constant 0 : index
    %74 = vector.load %arg6[%c0_39, %c0_40, %c0_41] : memref<3x32x16xf32, #tpu.memory_space<vmem>>, vector<1x32x16xf32>
    %75 = vector.shape_cast %74 : vector<1x32x16xf32> to vector<32x16xf32>
    %76 = vector.shape_cast %73 : vector<3x8x32xf32> to vector<24x32xf32>
    %cst_42 = arith.constant dense<0.000000e+00> : vector<24x16xf32>
    %77 = tpu.matmul %76, %75, %cst_42 {dimension_numbers = #tpu.dot_dimension_numbers<[1], [0], [0], [1], [0, 0, 1, 1], [], []>} : vector<24x32xf32>, vector<32x16xf32>, vector<24x16xf32> -> vector<24x16xf32>
    %78 = vector.shape_cast %77 : vector<24x16xf32> to vector<3x8x16xf32>
    %cst_43 = arith.constant 0.000000e+00 : f32
    %79 = vector.broadcast %cst_43 : f32 to vector<1x8x16xf32>
    %80 = tpu.concatenate %79, %78 in 0 : vector<1x8x16xf32>, vector<3x8x16xf32> -> vector<4x8x16xf32>
    %81 = arith.addf %72, %80 : vector<4x8x16xf32>
    %c0_44 = arith.constant 0 : index
    %c0_45 = arith.constant 0 : index
    %82 = vector.load %arg7[%c0_44, %c0_45] : memref<1x16xf32, #tpu.memory_space<vmem>>, vector<1x16xf32>
    %83 = vector.shape_cast %82 : vector<1x16xf32> to vector<1x1x16xf32>
    %84 = vector.broadcast %83 : vector<1x1x16xf32> to vector<4x8x16xf32>
    %85 = arith.addf %81, %84 : vector<4x8x16xf32>
    %cst_46 = arith.constant 0.000000e+00 : f32
    %86 = vector.broadcast %cst_46 : f32 to vector<4x8x16xf32>
    %87 = arith.maximumf %85, %86 : vector<4x8x16xf32>
    %88 = vector.extract_strided_slice %87 {offsets = [0, 0, 0], sizes = [1, 8, 16], strides = [1, 1, 1]} : vector<4x8x16xf32> to vector<1x8x16xf32>
    %89 = vector.shape_cast %88 : vector<1x8x16xf32> to vector<8x16xf32>
    %c0_47 = arith.constant 0 : index
    %c0_48 = arith.constant 0 : index
    %c0_49 = arith.constant 0 : index
    %90 = vector.load %arg8[%c0_47, %c0_48, %c0_49] : memref<4x16x10xf32, #tpu.memory_space<vmem>>, vector<1x16x10xf32>
    %91 = vector.shape_cast %90 : vector<1x16x10xf32> to vector<16x10xf32>
    %cst_50 = arith.constant dense<0.000000e+00> : vector<8x10xf32>
    %92 = tpu.matmul %89, %91, %cst_50 {dimension_numbers = #tpu.dot_dimension_numbers<[1], [0], [0], [1], [0, 0, 1, 1], [], []>} : vector<8x16xf32>, vector<16x10xf32>, vector<8x10xf32> -> vector<8x10xf32>
    %93 = vector.extract_strided_slice %87 {offsets = [1, 0, 0], sizes = [1, 8, 16], strides = [1, 1, 1]} : vector<4x8x16xf32> to vector<1x8x16xf32>
    %94 = vector.shape_cast %93 : vector<1x8x16xf32> to vector<8x16xf32>
    %c1_51 = arith.constant 1 : index
    %c0_52 = arith.constant 0 : index
    %c0_53 = arith.constant 0 : index
    %95 = vector.load %arg8[%c1_51, %c0_52, %c0_53] : memref<4x16x10xf32, #tpu.memory_space<vmem>>, vector<1x16x10xf32>
    %96 = vector.shape_cast %95 : vector<1x16x10xf32> to vector<16x10xf32>
    %cst_54 = arith.constant dense<0.000000e+00> : vector<8x10xf32>
    %97 = tpu.matmul %94, %96, %cst_54 {dimension_numbers = #tpu.dot_dimension_numbers<[1], [0], [0], [1], [0, 0, 1, 1], [], []>} : vector<8x16xf32>, vector<16x10xf32>, vector<8x10xf32> -> vector<8x10xf32>
    %98 = arith.addf %92, %97 : vector<8x10xf32>
    %99 = vector.extract_strided_slice %87 {offsets = [2, 0, 0], sizes = [1, 8, 16], strides = [1, 1, 1]} : vector<4x8x16xf32> to vector<1x8x16xf32>
    %100 = vector.shape_cast %99 : vector<1x8x16xf32> to vector<8x16xf32>
    %c2_55 = arith.constant 2 : index
    %c0_56 = arith.constant 0 : index
    %c0_57 = arith.constant 0 : index
    %101 = vector.load %arg8[%c2_55, %c0_56, %c0_57] : memref<4x16x10xf32, #tpu.memory_space<vmem>>, vector<1x16x10xf32>
    %102 = vector.shape_cast %101 : vector<1x16x10xf32> to vector<16x10xf32>
    %cst_58 = arith.constant dense<0.000000e+00> : vector<8x10xf32>
    %103 = tpu.matmul %100, %102, %cst_58 {dimension_numbers = #tpu.dot_dimension_numbers<[1], [0], [0], [1], [0, 0, 1, 1], [], []>} : vector<8x16xf32>, vector<16x10xf32>, vector<8x10xf32> -> vector<8x10xf32>
    %104 = arith.addf %98, %103 : vector<8x10xf32>
    %105 = vector.extract_strided_slice %87 {offsets = [3, 0, 0], sizes = [1, 8, 16], strides = [1, 1, 1]} : vector<4x8x16xf32> to vector<1x8x16xf32>
    %106 = vector.shape_cast %105 : vector<1x8x16xf32> to vector<8x16xf32>
    %c3 = arith.constant 3 : index
    %c0_59 = arith.constant 0 : index
    %c0_60 = arith.constant 0 : index
    %107 = vector.load %arg8[%c3, %c0_59, %c0_60] : memref<4x16x10xf32, #tpu.memory_space<vmem>>, vector<1x16x10xf32>
    %108 = vector.shape_cast %107 : vector<1x16x10xf32> to vector<16x10xf32>
    %cst_61 = arith.constant dense<0.000000e+00> : vector<8x10xf32>
    %109 = tpu.matmul %106, %108, %cst_61 {dimension_numbers = #tpu.dot_dimension_numbers<[1], [0], [0], [1], [0, 0, 1, 1], [], []>} : vector<8x16xf32>, vector<16x10xf32>, vector<8x10xf32> -> vector<8x10xf32>
    %110 = arith.addf %104, %109 : vector<8x10xf32>
    %c0_62 = arith.constant 0 : index
    %c0_63 = arith.constant 0 : index
    %111 = vector.load %arg9[%c0_62, %c0_63] : memref<1x10xf32, #tpu.memory_space<vmem>>, vector<1x10xf32>
    %112 = vector.broadcast %111 : vector<1x10xf32> to vector<8x10xf32>
    %113 = arith.addf %110, %112 : vector<8x10xf32>
    %c0_64 = arith.constant 0 : index
    %c0_65 = arith.constant 0 : index
    %114 = vector.load %arg10[%c0_64, %c0_65] : memref<8x10xf32, #tpu.memory_space<vmem>>, vector<8x10xf32>
    tpu.vector_store %arg10[%c0_64, %c0_65], %113 {strides = array<i32>} : memref<8x10xf32, #tpu.memory_space<vmem>>, vector<8x10xf32>,
    return
  }
  func.func @transform_0(%arg0: i32) -> (i32, i32, i32) {
    %c0_i32 = arith.constant 0 : i32
    %c0_i32_0 = arith.constant 0 : i32
    %c0_i32_1 = arith.constant 0 : i32
    return %c0_i32, %arg0, %c0_i32_0 : i32, i32, i32
  }
  func.func @transform_1(%arg0: i32) -> (i32, i32, i32) {
    %c0_i32 = arith.constant 0 : i32
    %c0_i32_0 = arith.constant 0 : i32
    %c0_i32_1 = arith.constant 0 : i32
    %c0_i32_2 = arith.constant 0 : i32
    return %c0_i32, %c0_i32_0, %c0_i32_1 : i32, i32, i32
  }
  func.func @transform_2(%arg0: i32) -> (i32, i32) {
    %c0_i32 = arith.constant 0 : i32
    %c0_i32_0 = arith.constant 0 : i32
    %c0_i32_1 = arith.constant 0 : i32
    return %c0_i32, %c0_i32_0 : i32, i32
  }
  func.func @transform_3(%arg0: i32) -> (i32, i32, i32) {
    %c0_i32 = arith.constant 0 : i32
    %c0_i32_0 = arith.constant 0 : i32
    %c0_i32_1 = arith.constant 0 : i32
    %c0_i32_2 = arith.constant 0 : i32
    return %c0_i32, %c0_i32_0, %c0_i32_1 : i32, i32, i32
  }
  func.func @transform_4(%arg0: i32) -> (i32, i32) {
    %c0_i32 = arith.constant 0 : i32
    %c0_i32_0 = arith.constant 0 : i32
    %c0_i32_1 = arith.constant 0 : i32
    return %c0_i32, %c0_i32_0 : i32, i32
  }
  func.func @transform_5(%arg0: i32) -> (i32, i32, i32) {
    %c0_i32 = arith.constant 0 : i32
    %c0_i32_0 = arith.constant 0 : i32
    %c0_i32_1 = arith.constant 0 : i32
    %c0_i32_2 = arith.constant 0 : i32
    return %c0_i32, %c0_i32_0, %c0_i32_1 : i32, i32, i32
  }
  func.func @transform_6(%arg0: i32) -> (i32, i32) {
    %c0_i32 = arith.constant 0 : i32
    %c0_i32_0 = arith.constant 0 : i32
    %c0_i32_1 = arith.constant 0 : i32
    return %c0_i32, %c0_i32_0 : i32, i32
  }
  func.func @transform_7(%arg0: i32) -> (i32, i32, i32) {
    %c0_i32 = arith.constant 0 : i32
    %c0_i32_0 = arith.constant 0 : i32
    %c0_i32_1 = arith.constant 0 : i32
    %c0_i32_2 = arith.constant 0 : i32
    return %c0_i32, %c0_i32_0, %c0_i32_1 : i32, i32, i32
  }
  func.func @transform_8(%arg0: i32) -> (i32, i32) {
    %c0_i32 = arith.constant 0 : i32
    %c0_i32_0 = arith.constant 0 : i32
    %c0_i32_1 = arith.constant 0 : i32
    return %c0_i32, %c0_i32_0 : i32, i32
  }
  func.func @transform_9(%arg0: i32) -> (i32, i32) {
    %c0_i32 = arith.constant 0 : i32
    %c0_i32_0 = arith.constant 0 : i32
    return %arg0, %c0_i32 : i32, i32
  }
}

</mosaic_0001>

<llo_original>
// kernel: tile.18
$region0: #{tile.18}
  #allocation0 [shape = 's32[1]{0}', space=sflag, size = 0x4, scoped, tag = 'scoped memory for tile.18']
  %s0 = inlined_call_operand.vmem [shape: f32[4], index: 0, kind: input, shape index: {}]
  %s1 = inlined_call_operand.vmem [shape: f32[16,4], index: 1, kind: output, shape index: {}]
  // Predicated region
  $region2: #{tile.18} parent=0 // pred_check
    _
  $region3: #{tile.18} parent=0 // pred_check_branch
    %3 = sbr.rel (0) target = $region5
  $region4: #{tile.18} parent=0 // pred_region
    _
  $region5: #{tile.18} parent=0 // pred_fallthru
    _
  %v4 = vld [vmem:[%s0] ss:$0 sm:$0xff]
  %5 = vst [vmem:[%s1] sm:$0xff] %v4
  %s6 = scalar_lea.vmem %s1, 8
  %7 = vst [vmem:[%s6] sm:$0xff] %v4

// kernel: tile.19
$region0: #{tile.19}
  %s0 = inlined_call_operand.vmem [shape: f32[16,4], index: 0, kind: input, shape index: {}]
  %s1 = inlined_call_operand.vmem [shape: f32[1,64], index: 1, kind: output, shape index: {}]
  $region1: #{tile.19} parent=0
    #allocation0 [shape = 'u8[4096]{0}', space=vmem, size = 0x1000, scoped, tag = 'scoped mem for output reshape']
    %v2 = vld [vmem:[%s0] sm:$0x1]
    %vm3 = vcmask 31744
    %4 = vst.msk [vmem:[#allocation0] sm:$0x1] %vm3, %v2
    %s5 = scalar_lea.vmem %s0, 15
    %v6 = vld [vmem:[%s5] sm:$0x1]
    %7 = vrot.lane.b32.xlu0 %v6, 60
    %v8 = vpop.permute.xlu0 %7
    %vm9 = vcmask 523744
    %10 = vst.msk [vmem:[#allocation0] sm:$0x1] %vm9, %v8
    %s11 = scalar_lea.vmem %s0, 14
    %v12 = vld [vmem:[%s11] sm:$0x1]
    %13 = vrot.lane.b32.xlu0 %v12, 56
    %v14 = vpop.permute.xlu0 %13
    %vm15 = vcmask 490944
    %16 = vst.msk [vmem:[#allocation0] sm:$0x1] %vm15, %v14
    %s17 = scalar_lea.vmem %s0, 13
    %v18 = vld [vmem:[%s17] sm:$0x1]
    %19 = vrot.lane.b32.xlu0 %v18, 52
    %v20 = vpop.permute.xlu0 %19
    %vm21 = vcmask 458144
    %22 = vst.msk [vmem:[#allocation0] sm:$0x1] %vm21, %v20
    %s23 = scalar_lea.vmem %s0, 12
    %v24 = vld [vmem:[%s23] sm:$0x1]
    %25 = vrot.lane.b32.xlu0 %v24, 48
    %v26 = vpop.permute.xlu0 %25
    %vm27 = vcmask 425344
    %28 = vst.msk [vmem:[#allocation0] sm:$0x1] %vm27, %v26
    %s29 = scalar_lea.vmem %s0, 11
    %v30 = vld [vmem:[%s29] sm:$0x1]
    %31 = vrot.lane.b32.xlu0 %v30, 44
    %v32 = vpop.permute.xlu0 %31
    %vm33 = vcmask 392544
    %34 = vst.msk [vmem:[#allocation0] sm:$0x1] %vm33, %v32
    %s35 = scalar_lea.vmem %s0, 10
    %v36 = vld [vmem:[%s35] sm:$0x1]
    %37 = vrot.lane.b32.xlu0 %v36, 40
    %v38 = vpop.permute.xlu0 %37
    %vm39 = vcmask 359744
    %40 = vst.msk [vmem:[#allocation0] sm:$0x1] %vm39, %v38
    %s41 = scalar_lea.vmem %s0, 9
    %v42 = vld [vmem:[%s41] sm:$0x1]
    %43 = vrot.lane.b32.xlu0 %v42, 36
    %v44 = vpop.permute.xlu0 %43
    %vm45 = vcmask 326944
    %46 = vst.msk [vmem:[#allocation0] sm:$0x1] %vm45, %v44
    %s47 = scalar_lea.vmem %s0, 8
    %v48 = vld [vmem:[%s47] sm:$0x1]
    %49 = vrot.lane.b32.xlu0 %v48, 32
    %v50 = vpop.permute.xlu0 %49
    %vm51 = vcmask 294144
    %52 = vst.msk [vmem:[#allocation0] sm:$0x1] %vm51, %v50
    %s53 = scalar_lea.vmem %s0, 7
    %v54 = vld [vmem:[%s53] sm:$0x1]
    %55 = vrot.lane.b32.xlu0 %v54, 28
    %v56 = vpop.permute.xlu0 %55
    %vm57 = vcmask 261344
    %58 = vst.msk [vmem:[#allocation0] sm:$0x1] %vm57, %v56
    %s59 = scalar_lea.vmem %s0, 6
    %v60 = vld [vmem:[%s59] sm:$0x1]
    %61 = vrot.lane.b32.xlu0 %v60, 24
    %v62 = vpop.permute.xlu0 %61
    %vm63 = vcmask 228544
    %64 = vst.msk [vmem:[#allocation0] sm:$0x1] %vm63, %v62
    %s65 = scalar_lea.vmem %s0, 5
    %v66 = vld [vmem:[%s65] sm:$0x1]
    %67 = vrot.lane.b32.xlu0 %v66, 20
    %v68 = vpop.permute.xlu0 %67
    %vm69 = vcmask 195744
    %70 = vst.msk [vmem:[#allocation0] sm:$0x1] %vm69, %v68
    %s71 = scalar_lea.vmem %s0, 4
    %v72 = vld [vmem:[%s71] sm:$0x1]
    %73 = vrot.lane.b32.xlu0 %v72, 16
    %v74 = vpop.permute.xlu0 %73
    %vm75 = vcmask 162944
    %76 = vst.msk [vmem:[#allocation0] sm:$0x1] %vm75, %v74
    %s77 = scalar_lea.vmem %s0, 3
    %v78 = vld [vmem:[%s77] sm:$0x1]
    %79 = vrot.lane.b32.xlu0 %v78, 12
    %v80 = vpop.permute.xlu0 %79
    %vm81 = vcmask 130144
    %82 = vst.msk [vmem:[#allocation0] sm:$0x1] %vm81, %v80
    %s83 = scalar_lea.vmem %s0, 2
    %v84 = vld [vmem:[%s83] sm:$0x1]
    %85 = vrot.lane.b32.xlu0 %v84, 8
    %v86 = vpop.permute.xlu0 %85
    %vm87 = vcmask 97344
    %88 = vst.msk [vmem:[#allocation0] sm:$0x1] %vm87, %v86
    %s89 = scalar_lea.vmem %s0, 1
    %v90 = vld [vmem:[%s89] sm:$0x1]
    %91 = vrot.lane.b32.xlu0 %v90, 4
    %v92 = vpop.permute.xlu0 %91
    %vm93 = vcmask 64544
    %94 = vst.msk [vmem:[#allocation0] sm:$0x1] %vm93, %v92
    %s96 = sshllo.u32 0, 1
    %v98 = vld [vmem:[#allocation0] sm:%s96]
    %s99 = sshllo.u32 0, 1
    %100 = vst [vmem:[%s1] sm:%s99] %v98

// kernel: tile.23
$region0: #{tile.23}
  #allocation0 [shape = 's32[1]{0}', space=sflag, size = 0x4, scoped, tag = 'scoped memory for tile.23']
  %s0 = inlined_call_operand.vmem [shape: f32[4], index: 0, kind: input, shape index: {}]
  %s1 = inlined_call_operand.vmem [shape: f32[8,4], index: 1, kind: output, shape index: {}]
  // Predicated region
  $region2: #{tile.23} parent=0 // pred_check
    _
  $region3: #{tile.23} parent=0 // pred_check_branch
    %3 = sbr.rel (0) target = $region5
  $region4: #{tile.23} parent=0 // pred_region
    _
  $region5: #{tile.23} parent=0 // pred_fallthru
    _
  %v4 = vld [vmem:[%s0] ss:$0 sm:$0xff]
  %5 = vst [vmem:[%s1] sm:$0xff] %v4

// kernel: tile.24
$region0: #{tile.24}
  %s0 = inlined_call_operand.vmem [shape: f32[8,4], index: 0, kind: input, shape index: {}]
  %s1 = inlined_call_operand.vmem [shape: f32[1,32], index: 1, kind: output, shape index: {}]
  $region1: #{tile.24} parent=0
    #allocation0 [shape = 'u8[4096]{0}', space=vmem, size = 0x1000, scoped, tag = 'scoped mem for output reshape']
    %v2 = vld [vmem:[%s0] sm:$0x1]
    %vm3 = vcmask 31744
    %4 = vst.msk [vmem:[#allocation0] sm:$0x1] %vm3, %v2
    %s5 = scalar_lea.vmem %s0, 7
    %v6 = vld [vmem:[%s5] sm:$0x1]
    %7 = vrot.lane.b32.xlu0 %v6, 28
    %v8 = vpop.permute.xlu0 %7
    %vm9 = vcmask 261344
    %10 = vst.msk [vmem:[#allocation0] sm:$0x1] %vm9, %v8
    %s11 = scalar_lea.vmem %s0, 6
    %v12 = vld [vmem:[%s11] sm:$0x1]
    %13 = vrot.lane.b32.xlu0 %v12, 24
    %v14 = vpop.permute.xlu0 %13
    %vm15 = vcmask 228544
    %16 = vst.msk [vmem:[#allocation0] sm:$0x1] %vm15, %v14
    %s17 = scalar_lea.vmem %s0, 5
    %v18 = vld [vmem:[%s17] sm:$0x1]
    %19 = vrot.lane.b32.xlu0 %v18, 20
    %v20 = vpop.permute.xlu0 %19
    %vm21 = vcmask 195744
    %22 = vst.msk [vmem:[#allocation0] sm:$0x1] %vm21, %v20
    %s23 = scalar_lea.vmem %s0, 4
    %v24 = vld [vmem:[%s23] sm:$0x1]
    %25 = vrot.lane.b32.xlu0 %v24, 16
    %v26 = vpop.permute.xlu0 %25
    %vm27 = vcmask 162944
    %28 = vst.msk [vmem:[#allocation0] sm:$0x1] %vm27, %v26
    %s29 = scalar_lea.vmem %s0, 3
    %v30 = vld [vmem:[%s29] sm:$0x1]
    %31 = vrot.lane.b32.xlu0 %v30, 12
    %v32 = vpop.permute.xlu0 %31
    %vm33 = vcmask 130144
    %34 = vst.msk [vmem:[#allocation0] sm:$0x1] %vm33, %v32
    %s35 = scalar_lea.vmem %s0, 2
    %v36 = vld [vmem:[%s35] sm:$0x1]
    %37 = vrot.lane.b32.xlu0 %v36, 8
    %v38 = vpop.permute.xlu0 %37
    %vm39 = vcmask 97344
    %40 = vst.msk [vmem:[#allocation0] sm:$0x1] %vm39, %v38
    %s41 = scalar_lea.vmem %s0, 1
    %v42 = vld [vmem:[%s41] sm:$0x1]
    %43 = vrot.lane.b32.xlu0 %v42, 4
    %v44 = vpop.permute.xlu0 %43
    %vm45 = vcmask 64544
    %46 = vst.msk [vmem:[#allocation0] sm:$0x1] %vm45, %v44
    %s48 = sshllo.u32 0, 1
    %v50 = vld [vmem:[#allocation0] sm:%s48]
    %s51 = sshllo.u32 0, 1
    %52 = vst [vmem:[%s1] sm:%s51] %v50

// kernel: tile.28
$region0: #{tile.28}
  #allocation0 [shape = 's32[1]{0}', space=sflag, size = 0x4, scoped, tag = 'scoped memory for tile.28']
  %s0 = inlined_call_operand.vmem [shape: f32[4], index: 0, kind: input, shape index: {}]
  %s1 = inlined_call_operand.vmem [shape: f32[4,4], index: 1, kind: output, shape index: {}]
  // Predicated region
  $region2: #{tile.28} parent=0 // pred_check
    _
  $region3: #{tile.28} parent=0 // pred_check_branch
    %3 = sbr.rel (0) target = $region5
  $region4: #{tile.28} parent=0 // pred_region
    _
  $region5: #{tile.28} parent=0 // pred_fallthru
    _
  %v4 = vld [vmem:[%s0] ss:$0 sm:$0xff]
  %5 = vst [vmem:[%s1] sm:$0xf] %v4

// kernel: tile.29
$region0: #{tile.29}
  %s0 = inlined_call_operand.vmem [shape: f32[4,4], index: 0, kind: input, shape index: {}]
  %s1 = inlined_call_operand.vmem [shape: f32[1,16], index: 1, kind: output, shape index: {}]
  $region1: #{tile.29} parent=0
    #allocation0 [shape = 'u8[4096]{0}', space=vmem, size = 0x1000, scoped, tag = 'scoped mem for output reshape']
    #allocation1 [shape = 'u8[4096]{0}', space=vmem, size = 0x1000, scoped, tag = 'scoped mem for input reshape']
    %s3 = sshllo.u32 0, 4
    %v4 = vld [vmem:[%s0] sm:%s3]
    %5 = vst [vmem:[#allocation1] sm:%s3] %v4
    %v6 = vld [vmem:[#allocation1] sm:$0x1]
    %vm7 = vcmask 31744
    %8 = vst.msk [vmem:[#allocation0] sm:$0x1] %vm7, %v6
    %s9 = scalar_lea.vmem [#allocation1], 3
    %v10 = vld [vmem:[%s9] sm:$0x1]
    %11 = vrot.lane.b32.xlu0 %v10, 12
    %v12 = vpop.permute.xlu0 %11
    %vm13 = vcmask 130144
    %14 = vst.msk [vmem:[#allocation0] sm:$0x1] %vm13, %v12
    %s15 = scalar_lea.vmem [#allocation1], 2
    %v16 = vld [vmem:[%s15] sm:$0x1]
    %17 = vrot.lane.b32.xlu0 %v16, 8
    %v18 = vpop.permute.xlu0 %17
    %vm19 = vcmask 97344
    %20 = vst.msk [vmem:[#allocation0] sm:$0x1] %vm19, %v18
    %s21 = scalar_lea.vmem [#allocation1], 1
    %v22 = vld [vmem:[%s21] sm:$0x1]
    %23 = vrot.lane.b32.xlu0 %v22, 4
    %v24 = vpop.permute.xlu0 %23
    %vm25 = vcmask 64544
    %26 = vst.msk [vmem:[#allocation0] sm:$0x1] %vm25, %v24
    %s28 = sshllo.u32 0, 1
    %v30 = vld [vmem:[#allocation0] sm:%s28]
    %s31 = sshllo.u32 0, 1
    %32 = vst [vmem:[%s1] sm:%s31] %v30

// kernel: simple_cnn_forward.1
$region0: #{simple_cnn_forward.1}
  #allocation0 [shape = 'u32[]', space=smem, size = 0x4, offset = 0x4, fixed_abs, tag = 'smem constant byte address 0x4 - core index']
  #allocation1 [shape = 'u32[144,128]{1,0:T(1,128)}', space=vmem, size = 0x12000, scoped, tag = 'internal scratch']
  %s0 = inlined_call_operand.vmem [shape: f32[32,8,96], index: 0, kind: input, shape index: {}]
  %s1 = inlined_call_operand.vmem [shape: f32[3,96,64], index: 1, kind: input, shape index: {}]
  %s2 = inlined_call_operand.vmem [shape: f32[1,64], index: 2, kind: input, shape index: {}]
  %s3 = inlined_call_operand.vmem [shape: f32[3,64,32], index: 3, kind: input, shape index: {}]
  %s4 = inlined_call_operand.vmem [shape: f32[1,32], index: 4, kind: input, shape index: {}]
  %s5 = inlined_call_operand.vmem [shape: f32[3,32,16], index: 5, kind: input, shape index: {}]
  %s6 = inlined_call_operand.vmem [shape: f32[1,16], index: 6, kind: input, shape index: {}]
  %s7 = inlined_call_operand.vmem [shape: f32[4,16,10], index: 7, kind: input, shape index: {}]
  %s8 = inlined_call_operand.vmem [shape: f32[1,10], index: 8, kind: input, shape index: {}]
  %s9 = inlined_call_operand.vmem [shape: f32[8,10], index: 9, kind: output, shape index: {}]
  %s10 = sld [smem:[#allocation0]]
  $region46: #{simple_cnn_forward.1} parent=0
    _
  %s12 = ssub.s32 1, %s10
  %s13 = scalar_select 0, %s12, %s10
  // Predicated region
  $region2: #{simple_cnn_forward.1} parent=0 // pred_check
    _
  $region3: #{simple_cnn_forward.1} parent=0 // pred_check_branch
    %15 = sbr.rel (0) target = $region5
  $region4: #{simple_cnn_forward.1} parent=0 // pred_region
    _
  $region5: #{simple_cnn_forward.1} parent=0 // pred_fallthru
    _
  // Predicated region
  $region6: #{simple_cnn_forward.1} parent=0 // pred_check
    _
  $region7: #{simple_cnn_forward.1} parent=0 // pred_check_branch
    %17 = sbr.rel (0) target = $region9
  $region8: #{simple_cnn_forward.1} parent=0 // pred_region
    _
  $region9: #{simple_cnn_forward.1} parent=0 // pred_fallthru
    _
  // Predicated region
  $region10: #{simple_cnn_forward.1} parent=0 // pred_check
    _
  $region11: #{simple_cnn_forward.1} parent=0 // pred_check_branch
    %19 = sbr.rel (0) target = $region13
  $region12: #{simple_cnn_forward.1} parent=0 // pred_region
    _
  $region13: #{simple_cnn_forward.1} parent=0 // pred_fallthru
    _
  // Predicated region
  $region14: #{simple_cnn_forward.1} parent=0 // pred_check
    _
  $region15: #{simple_cnn_forward.1} parent=0 // pred_check_branch
    %21 = sbr.rel (0) target = $region17
  $region16: #{simple_cnn_forward.1} parent=0 // pred_region
    _
  $region17: #{simple_cnn_forward.1} parent=0 // pred_fallthru
    _
  // Predicated region
  $region18: #{simple_cnn_forward.1} parent=0 // pred_check
    _
  $region19: #{simple_cnn_forward.1} parent=0 // pred_check_branch
    %23 = sbr.rel (0) target = $region21
  $region20: #{simple_cnn_forward.1} parent=0 // pred_region
    _
  $region21: #{simple_cnn_forward.1} parent=0 // pred_fallthru
    _
  // Predicated region
  $region22: #{simple_cnn_forward.1} parent=0 // pred_check
    _
  $region23: #{simple_cnn_forward.1} parent=0 // pred_check_branch
    %25 = sbr.rel (0) target = $region25
  $region24: #{simple_cnn_forward.1} parent=0 // pred_region
    _
  $region25: #{simple_cnn_forward.1} parent=0 // pred_fallthru
    _
  // Predicated region
  $region26: #{simple_cnn_forward.1} parent=0 // pred_check
    _
  $region27: #{simple_cnn_forward.1} parent=0 // pred_check_branch
    %27 = sbr.rel (0) target = $region29
  $region28: #{simple_cnn_forward.1} parent=0 // pred_region
    _
  $region29: #{simple_cnn_forward.1} parent=0 // pred_fallthru
    _
  // Predicated region
  $region30: #{simple_cnn_forward.1} parent=0 // pred_check
    _
  $region31: #{simple_cnn_forward.1} parent=0 // pred_check_branch
    %29 = sbr.rel (0) target = $region33
  $region32: #{simple_cnn_forward.1} parent=0 // pred_region
    _
  $region33: #{simple_cnn_forward.1} parent=0 // pred_fallthru
    _
  // Predicated region
  $region34: #{simple_cnn_forward.1} parent=0 // pred_check
    _
  $region35: #{simple_cnn_forward.1} parent=0 // pred_check_branch
    %31 = sbr.rel (0) target = $region37
  $region36: #{simple_cnn_forward.1} parent=0 // pred_region
    _
  $region37: #{simple_cnn_forward.1} parent=0 // pred_fallthru
    _
  %v32 = vld [vmem:[%s0] sm:$0xff]
  %v33 = vld [vmem:[%s0 + $0x8] sm:$0xff]
  %v34 = vld [vmem:[%s0 + $0x10] sm:$0xff]
  %v35 = vld [vmem:[%s0 + $0x18] sm:$0xff]
  %v36 = vld [vmem:[%s0 + $0x20] sm:$0xff]
  %v37 = vld [vmem:[%s0 + $0x28] sm:$0xff]
  %v38 = vld [vmem:[%s0 + $0x30] sm:$0xff]
  %v39 = vld [vmem:[%s0 + $0x38] sm:$0xff]
  %v40 = vld [vmem:[%s0 + $0x40] sm:$0xff]
  %v41 = vld [vmem:[%s0 + $0x48] sm:$0xff]
  %v42 = vld [vmem:[%s0 + $0x50] sm:$0xff]
  %v43 = vld [vmem:[%s0 + $0x58] sm:$0xff]
  %v44 = vld [vmem:[%s0 + $0x60] sm:$0xff]
  %v45 = vld [vmem:[%s0 + $0x68] sm:$0xff]
  %v46 = vld [vmem:[%s0 + $0x70] sm:$0xff]
  %v47 = vld [vmem:[%s0 + $0x78] sm:$0xff]
  %v48 = vld [vmem:[%s0 + $0x80] sm:$0xff]
  %v49 = vld [vmem:[%s0 + $0x88] sm:$0xff]
  %v50 = vld [vmem:[%s0 + $0x90] sm:$0xff]
  %v51 = vld [vmem:[%s0 + $0x98] sm:$0xff]
  %v52 = vld [vmem:[%s0 + $0xa0] sm:$0xff]
  %v53 = vld [vmem:[%s0 + $0xa8] sm:$0xff]
  %v54 = vld [vmem:[%s0 + $0xb0] sm:$0xff]
  %v55 = vld [vmem:[%s0 + $0xb8] sm:$0xff]
  %v56 = vld [vmem:[%s0 + $0xc0] sm:$0xff]
  %v57 = vld [vmem:[%s0 + $0xc8] sm:$0xff]
  %v58 = vld [vmem:[%s0 + $0xd0] sm:$0xff]
  %v59 = vld [vmem:[%s0 + $0xd8] sm:$0xff]
  %v60 = vld [vmem:[%s0 + $0xe0] sm:$0xff]
  %v61 = vld [vmem:[%s0 + $0xe8] sm:$0xff]
  %v62 = vld [vmem:[%s0 + $0xf0] sm:$0xff]
  %v63 = vld [vmem:[%s0 + $0xf8] sm:$0xff]
  %s64 = scalar_lea.vmem %s1, 96
  %v65 = vld [vmem:[%s64] sm:$0xff]
  %v66 = vld [vmem:[%s64 + $0x8] sm:$0xff]
  %v67 = vld [vmem:[%s64 + $0x10] sm:$0xff]
  %v68 = vld [vmem:[%s64 + $0x18] sm:$0xff]
  %v69 = vld [vmem:[%s64 + $0x20] sm:$0xff]
  %v70 = vld [vmem:[%s64 + $0x28] sm:$0xff]
  %v71 = vld [vmem:[%s64 + $0x30] sm:$0xff]
  %v72 = vld [vmem:[%s64 + $0x38] sm:$0xff]
  %v73 = vld [vmem:[%s64 + $0x40] sm:$0xff]
  %v74 = vld [vmem:[%s64 + $0x48] sm:$0xff]
  %v75 = vld [vmem:[%s64 + $0x50] sm:$0xff]
  %v76 = vld [vmem:[%s64 + $0x58] sm:$0xff]
  %vm77 = vcmask 785408
  %v79 = vsel %vm77, %v32, 0
  %v82 = vsel %vm77, %v34, 0
  %v85 = vsel %vm77, %v36, 0
  %v88 = vsel %vm77, %v38, 0
  %v91 = vsel %vm77, %v40, 0
  %v94 = vsel %vm77, %v42, 0
  %v97 = vsel %vm77, %v44, 0
  %v100 = vsel %vm77, %v46, 0
  %v103 = vsel %vm77, %v48, 0
  %v106 = vsel %vm77, %v50, 0
  %v109 = vsel %vm77, %v52, 0
  %v112 = vsel %vm77, %v54, 0
  %v115 = vsel %vm77, %v56, 0
  %v118 = vsel %vm77, %v58, 0
  %v121 = vsel %vm77, %v60, 0
  %v124 = vsel %vm77, %v62, 0
  %126 = vmatprep.subr.mxu0 0.0
  %127 = vmatpush1.msra.mxu0 %v65
  %128 = vmatprep.subr.mxu0 0.0
  %129 = vmatpush1.msra.mxu0 %v66
  %130 = vmatprep.subr.mxu0 0.0
  %131 = vmatpush1.msra.mxu0 %v67
  %132 = vmatprep.subr.mxu0 0.0
  %133 = vmatpush1.msra.mxu0 %v68
  %134 = vmatprep.subr.mxu0 0.0
  %135 = vmatpush1.msra.mxu0 %v69
  %136 = vmatprep.subr.mxu0 0.0
  %137 = vmatpush1.msra.mxu0 %v70
  %138 = vmatprep.subr.mxu0 0.0
  %139 = vmatpush1.msra.mxu0 %v71
  %140 = vmatprep.subr.mxu0 0.0
  %141 = vmatpush1.msra.mxu0 %v72
  %142 = vmatprep.subr.mxu0 0.0
  %143 = vmatpush1.msra.mxu0 %v73
  %144 = vmatprep.subr.mxu0 0.0
  %145 = vmatpush1.msra.mxu0 %v74
  %146 = vmatprep.subr.mxu0 0.0
  %147 = vmatpush1.msra.mxu0 %v75
  %148 = vmatprep.subr.mxu0 0.0
  %149 = vmatpush1.msra.mxu0 %v76
  %150 = vmatprep.subr.mxu0 0.0
  %151 = vmatpush1.msra.mxu0 0.0
  %152 = vmatprep.subr.mxu0 0.0
  %153 = vmatpush1.msra.mxu0 0.0
  %154 = vmatprep.subr.mxu0 0.0
  %155 = vmatpush1.msra.mxu0 0.0
  %156 = vmatprep.subr.mxu0 0.0
  %157 = vmatpush1.msra.mxu0 0.0
  %158 = vmatprep.subr.mxu0 0.0
  %159 = vmatpush1.msra.mxu0 0.0
  %160 = vmatprep.subr.mxu0 0.0
  %161 = vmatpush1.msra.mxu0 0.0
  %162 = vmatprep.subr.mxu0 0.0
  %163 = vmatpush1.msra.mxu0 0.0
  %164 = vmatprep.subr.mxu0 0.0
  %165 = vmatpush1.msra.mxu0 0.0
  %166 = vmatprep.subr.mxu0 0.0
  %167 = vmatpush1.msra.mxu0 0.0
  %168 = vmatprep.subr.mxu0 0.0
  %169 = vmatpush1.msra.mxu0 0.0
  %170 = vmatprep.subr.mxu0 0.0
  %171 = vmatpush1.msra.mxu0 0.0
  %172 = vmatprep.subr.mxu0 0.0
  %173 = vmatpush1.msra.mxu0 0.0
  %174 = vmatprep.subr.mxu0 0.0
  %175 = vmatpush1.msra.mxu0 0.0
  %176 = vmatprep.subr.mxu0 0.0
  %177 = vmatpush1.msra.mxu0 0.0
  %178 = vmatprep.subr.mxu0 0.0
  %179 = vmatpush1.msra.mxu0 0.0
  %180 = vmatprep.subr.mxu0 0.0
  %181 = vmatpush1.msra.mxu0 0.0
  %182 = vmatprep.subr.mxu0 0.0
  %183 = vmatpush1.msra.mxu0 0.0
  %184 = vmatprep.subr.mxu0 0.0
  %185 = vmatpush1.msra.mxu0 0.0
  %186 = vmatprep.subr.mxu0 0.0
  %187 = vmatpush1.msra.mxu0 0.0
  %188 = vmatprep.subr.mxu0 0.0
  %189 = vmatpush1.msra.mxu0 0.0
  %190 = vmatprep.mubr.f32.mxu0 0.0
  %191 = vmatmul.mubr.f32.gmra.mrb[0].mxu0 %v79
  %v192 = vpop.f32.mrb[0].mxu0
  %v193 = vadd.f32 0.0, %v192
  %v194 = vpop.f32.mrb[0].mxu0
  %195 = vmatprep.mubr.f32.mxu0 0.0
  %196 = vmatmul.mubr.f32.gmra.mrb[0].mxu0 %v82
  %v197 = vpop.f32.mrb[0].mxu0
  %v198 = vadd.f32 0.0, %v197
  %v199 = vpop.f32.mrb[0].mxu0
  %200 = vmatprep.mubr.f32.mxu0 0.0
  %201 = vmatmul.mubr.f32.gmra.mrb[0].mxu0 %v85
  %v202 = vpop.f32.mrb[0].mxu0
  %v203 = vadd.f32 0.0, %v202
  %v204 = vpop.f32.mrb[0].mxu0
  %205 = vmatprep.mubr.f32.mxu0 0.0
  %206 = vmatmul.mubr.f32.gmra.mrb[0].mxu0 %v88
  %v207 = vpop.f32.mrb[0].mxu0
  %v208 = vadd.f32 0.0, %v207
  %v209 = vpop.f32.mrb[0].mxu0
  %210 = vmatprep.mubr.f32.mxu0 0.0
  %211 = vmatmul.mubr.f32.gmra.mrb[0].mxu0 %v91
  %v212 = vpop.f32.mrb[0].mxu0
  %v213 = vadd.f32 0.0, %v212
  %v214 = vpop.f32.mrb[0].mxu0
  %215 = vmatprep.mubr.f32.mxu0 0.0
  %216 = vmatmul.mubr.f32.gmra.mrb[0].mxu0 %v94
  %v217 = vpop.f32.mrb[0].mxu0
  %v218 = vadd.f32 0.0, %v217
  %v219 = vpop.f32.mrb[0].mxu0
  %220 = vmatprep.mubr.f32.mxu0 0.0
  %221 = vmatmul.mubr.f32.gmra.mrb[0].mxu0 %v97
  %v222 = vpop.f32.mrb[0].mxu0
  %v223 = vadd.f32 0.0, %v222
  %v224 = vpop.f32.mrb[0].mxu0
  %225 = vmatprep.mubr.f32.mxu0 0.0
  %226 = vmatmul.mubr.f32.gmra.mrb[0].mxu0 %v100
  %v227 = vpop.f32.mrb[0].mxu0
  %v228 = vadd.f32 0.0, %v227
  %v229 = vpop.f32.mrb[0].mxu0
  %230 = vmatprep.mubr.f32.mxu0 0.0
  %231 = vmatmul.mubr.f32.gmra.mrb[0].mxu0 %v103
  %v232 = vpop.f32.mrb[0].mxu0
  %v233 = vadd.f32 0.0, %v232
  %v234 = vpop.f32.mrb[0].mxu0
  %235 = vmatprep.mubr.f32.mxu0 0.0
  %236 = vmatmul.mubr.f32.gmra.mrb[0].mxu0 %v106
  %v237 = vpop.f32.mrb[0].mxu0
  %v238 = vadd.f32 0.0, %v237
  %v239 = vpop.f32.mrb[0].mxu0
  %240 = vmatprep.mubr.f32.mxu0 0.0
  %241 = vmatmul.mubr.f32.gmra.mrb[0].mxu0 %v109
  %v242 = vpop.f32.mrb[0].mxu0
  %v243 = vadd.f32 0.0, %v242
  %v244 = vpop.f32.mrb[0].mxu0
  %245 = vmatprep.mubr.f32.mxu0 0.0
  %246 = vmatmul.mubr.f32.gmra.mrb[0].mxu0 %v112
  %v247 = vpop.f32.mrb[0].mxu0
  %v248 = vadd.f32 0.0, %v247
  %v249 = vpop.f32.mrb[0].mxu0
  %250 = vmatprep.mubr.f32.mxu0 0.0
  %251 = vmatmul.mubr.f32.gmra.mrb[0].mxu0 %v115
  %v252 = vpop.f32.mrb[0].mxu0
  %v253 = vadd.f32 0.0, %v252
  %v254 = vpop.f32.mrb[0].mxu0
  %255 = vmatprep.mubr.f32.mxu0 0.0
  %256 = vmatmul.mubr.f32.gmra.mrb[0].mxu0 %v118
  %v257 = vpop.f32.mrb[0].mxu0
  %v258 = vadd.f32 0.0, %v257
  %v259 = vpop.f32.mrb[0].mxu0
  %260 = vmatprep.mubr.f32.mxu0 0.0
  %261 = vmatmul.mubr.f32.gmra.mrb[0].mxu0 %v121
  %v262 = vpop.f32.mrb[0].mxu0
  %v263 = vadd.f32 0.0, %v262
  %v264 = vpop.f32.mrb[0].mxu0
  %265 = vmatprep.mubr.f32.mxu0 0.0
  %266 = vmatmul.mubr.f32.gmra.mrb[0].mxu0 %v124
  %v267 = vpop.f32.mrb[0].mxu0
  %v268 = vadd.f32 0.0, %v267
  %v269 = vpop.f32.mrb[0].mxu0
  %270 = vdwg.mxu0
  %s271 = scalar_lea.vmem %s1, 192
  %v272 = vld [vmem:[%s271] sm:$0xff]
  %v273 = vld [vmem:[%s271 + $0x8] sm:$0xff]
  %v274 = vld [vmem:[%s271 + $0x10] sm:$0xff]
  %v275 = vld [vmem:[%s271 + $0x18] sm:$0xff]
  %v276 = vld [vmem:[%s271 + $0x20] sm:$0xff]
  %v277 = vld [vmem:[%s271 + $0x28] sm:$0xff]
  %v278 = vld [vmem:[%s271 + $0x30] sm:$0xff]
  %v279 = vld [vmem:[%s271 + $0x38] sm:$0xff]
  %v280 = vld [vmem:[%s271 + $0x40] sm:$0xff]
  %v281 = vld [vmem:[%s271 + $0x48] sm:$0xff]
  %v282 = vld [vmem:[%s271 + $0x50] sm:$0xff]
  %v283 = vld [vmem:[%s271 + $0x58] sm:$0xff]
  %v285 = vsel %vm77, %v33, 0
  %v288 = vsel %vm77, %v35, 0
  %v291 = vsel %vm77, %v37, 0
  %v294 = vsel %vm77, %v39, 0
  %v297 = vsel %vm77, %v41, 0
  %v300 = vsel %vm77, %v43, 0
  %v303 = vsel %vm77, %v45, 0
  %v306 = vsel %vm77, %v47, 0
  %v309 = vsel %vm77, %v49, 0
  %v312 = vsel %vm77, %v51, 0
  %v315 = vsel %vm77, %v53, 0
  %v318 = vsel %vm77, %v55, 0
  %v321 = vsel %vm77, %v57, 0
  %v324 = vsel %vm77, %v59, 0
  %v327 = vsel %vm77, %v61, 0
  %v330 = vsel %vm77, %v63, 0
  %332 = vmatprep.subr.mxu0 0.0
  %333 = vmatpush1.msra.mxu0 %v272
  %334 = vmatprep.subr.mxu0 0.0
  %335 = vmatpush1.msra.mxu0 %v273
  %336 = vmatprep.subr.mxu0 0.0
  %337 = vmatpush1.msra.mxu0 %v274
  %338 = vmatprep.subr.mxu0 0.0
  %339 = vmatpush1.msra.mxu0 %v275
  %340 = vmatprep.subr.mxu0 0.0
  %341 = vmatpush1.msra.mxu0 %v276
  %342 = vmatprep.subr.mxu0 0.0
  %343 = vmatpush1.msra.mxu0 %v277
  %344 = vmatprep.subr.mxu0 0.0
  %345 = vmatpush1.msra.mxu0 %v278
  %346 = vmatprep.subr.mxu0 0.0
  %347 = vmatpush1.msra.mxu0 %v279
  %348 = vmatprep.subr.mxu0 0.0
  %349 = vmatpush1.msra.mxu0 %v280
  %350 = vmatprep.subr.mxu0 0.0
  %351 = vmatpush1.msra.mxu0 %v281
  %352 = vmatprep.subr.mxu0 0.0
  %353 = vmatpush1.msra.mxu0 %v282
  %354 = vmatprep.subr.mxu0 0.0
  %355 = vmatpush1.msra.mxu0 %v283
  %356 = vmatprep.subr.mxu0 0.0
  %357 = vmatpush1.msra.mxu0 0.0
  %358 = vmatprep.subr.mxu0 0.0
  %359 = vmatpush1.msra.mxu0 0.0
  %360 = vmatprep.subr.mxu0 0.0
  %361 = vmatpush1.msra.mxu0 0.0
  %362 = vmatprep.subr.mxu0 0.0
  %363 = vmatpush1.msra.mxu0 0.0
  %364 = vmatprep.subr.mxu0 0.0
  %365 = vmatpush1.msra.mxu0 0.0
  %366 = vmatprep.subr.mxu0 0.0
  %367 = vmatpush1.msra.mxu0 0.0
  %368 = vmatprep.subr.mxu0 0.0
  %369 = vmatpush1.msra.mxu0 0.0
  %370 = vmatprep.subr.mxu0 0.0
  %371 = vmatpush1.msra.mxu0 0.0
  %372 = vmatprep.subr.mxu0 0.0
  %373 = vmatpush1.msra.mxu0 0.0
  %374 = vmatprep.subr.mxu0 0.0
  %375 = vmatpush1.msra.mxu0 0.0
  %376 = vmatprep.subr.mxu0 0.0
  %377 = vmatpush1.msra.mxu0 0.0
  %378 = vmatprep.subr.mxu0 0.0
  %379 = vmatpush1.msra.mxu0 0.0
  %380 = vmatprep.subr.mxu0 0.0
  %381 = vmatpush1.msra.mxu0 0.0
  %382 = vmatprep.subr.mxu0 0.0
  %383 = vmatpush1.msra.mxu0 0.0
  %384 = vmatprep.subr.mxu0 0.0
  %385 = vmatpush1.msra.mxu0 0.0
  %386 = vmatprep.subr.mxu0 0.0
  %387 = vmatpush1.msra.mxu0 0.0
  %388 = vmatprep.subr.mxu0 0.0
  %389 = vmatpush1.msra.mxu0 0.0
  %390 = vmatprep.subr.mxu0 0.0
  %391 = vmatpush1.msra.mxu0 0.0
  %392 = vmatprep.subr.mxu0 0.0
  %393 = vmatpush1.msra.mxu0 0.0
  %394 = vmatprep.subr.mxu0 0.0
  %395 = vmatpush1.msra.mxu0 0.0
  %396 = vmatprep.mubr.f32.mxu0 0.0
  %397 = vmatmul.mubr.f32.gmra.mrb[0].mxu0 %v285
  %v398 = vpop.f32.mrb[0].mxu0
  %v399 = vadd.f32 0.0, %v398
  %v400 = vpop.f32.mrb[0].mxu0
  %401 = vmatprep.mubr.f32.mxu0 0.0
  %402 = vmatmul.mubr.f32.gmra.mrb[0].mxu0 %v288
  %v403 = vpop.f32.mrb[0].mxu0
  %v404 = vadd.f32 0.0, %v403
  %v405 = vpop.f32.mrb[0].mxu0
  %406 = vmatprep.mubr.f32.mxu0 0.0
  %407 = vmatmul.mubr.f32.gmra.mrb[0].mxu0 %v291
  %v408 = vpop.f32.mrb[0].mxu0
  %v409 = vadd.f32 0.0, %v408
  %v410 = vpop.f32.mrb[0].mxu0
  %411 = vmatprep.mubr.f32.mxu0 0.0
  %412 = vmatmul.mubr.f32.gmra.mrb[0].mxu0 %v294
  %v413 = vpop.f32.mrb[0].mxu0
  %v414 = vadd.f32 0.0, %v413
  %v415 = vpop.f32.mrb[0].mxu0
  %416 = vmatprep.mubr.f32.mxu0 0.0
  %417 = vmatmul.mubr.f32.gmra.mrb[0].mxu0 %v297
  %v418 = vpop.f32.mrb[0].mxu0
  %v419 = vadd.f32 0.0, %v418
  %v420 = vpop.f32.mrb[0].mxu0
  %421 = vmatprep.mubr.f32.mxu0 0.0
  %422 = vmatmul.mubr.f32.gmra.mrb[0].mxu0 %v300
  %v423 = vpop.f32.mrb[0].mxu0
  %v424 = vadd.f32 0.0, %v423
  %v425 = vpop.f32.mrb[0].mxu0
  %426 = vmatprep.mubr.f32.mxu0 0.0
  %427 = vmatmul.mubr.f32.gmra.mrb[0].mxu0 %v303
  %v428 = vpop.f32.mrb[0].mxu0
  %v429 = vadd.f32 0.0, %v428
  %v430 = vpop.f32.mrb[0].mxu0
  %431 = vmatprep.mubr.f32.mxu0 0.0
  %432 = vmatmul.mubr.f32.gmra.mrb[0].mxu0 %v306
  %v433 = vpop.f32.mrb[0].mxu0
  %v434 = vadd.f32 0.0, %v433
  %v435 = vpop.f32.mrb[0].mxu0
  %436 = vmatprep.mubr.f32.mxu0 0.0
  %437 = vmatmul.mubr.f32.gmra.mrb[0].mxu0 %v309
  %v438 = vpop.f32.mrb[0].mxu0
  %v439 = vadd.f32 0.0, %v438
  %v440 = vpop.f32.mrb[0].mxu0
  %441 = vmatprep.mubr.f32.mxu0 0.0
  %442 = vmatmul.mubr.f32.gmra.mrb[0].mxu0 %v312
  %v443 = vpop.f32.mrb[0].mxu0
  %v444 = vadd.f32 0.0, %v443
  %v445 = vpop.f32.mrb[0].mxu0
  %446 = vmatprep.mubr.f32.mxu0 0.0
  %447 = vmatmul.mubr.f32.gmra.mrb[0].mxu0 %v315
  %v448 = vpop.f32.mrb[0].mxu0
  %v449 = vadd.f32 0.0, %v448
  %v450 = vpop.f32.mrb[0].mxu0
  %451 = vmatprep.mubr.f32.mxu0 0.0
  %452 = vmatmul.mubr.f32.gmra.mrb[0].mxu0 %v318
  %v453 = vpop.f32.mrb[0].mxu0
  %v454 = vadd.f32 0.0, %v453
  %v455 = vpop.f32.mrb[0].mxu0
  %456 = vmatprep.mubr.f32.mxu0 0.0
  %457 = vmatmul.mubr.f32.gmra.mrb[0].mxu0 %v321
  %v458 = vpop.f32.mrb[0].mxu0
  %v459 = vadd.f32 0.0, %v458
  %v460 = vpop.f32.mrb[0].mxu0
  %461 = vmatprep.mubr.f32.mxu0 0.0
  %462 = vmatmul.mubr.f32.gmra.mrb[0].mxu0 %v324
  %v463 = vpop.f32.mrb[0].mxu0
  %v464 = vadd.f32 0.0, %v463
  %v465 = vpop.f32.mrb[0].mxu0
  %466 = vmatprep.mubr.f32.mxu0 0.0
  %467 = vmatmul.mubr.f32.gmra.mrb[0].mxu0 %v327
  %v468 = vpop.f32.mrb[0].mxu0
  %v469 = vadd.f32 0.0, %v468
  %v470 = vpop.f32.mrb[0].mxu0
  %471 = vmatprep.mubr.f32.mxu0 0.0
  %472 = vmatmul.mubr.f32.gmra.mrb[0].mxu0 %v330
  %v473 = vpop.f32.mrb[0].mxu0
  %v474 = vadd.f32 0.0, %v473
  %v475 = vpop.f32.mrb[0].mxu0
  %476 = vdwg.mxu0
  %v477 = vadd.f32 %v193, %v399
  %v478 = vadd.f32 %v198, %v404
  %v479 = vadd.f32 %v203, %v409
  %v480 = vadd.f32 %v208, %v414
  %v481 = vadd.f32 %v213, %v419
  %v482 = vadd.f32 %v218, %v424
  %v483 = vadd.f32 %v223, %v429
  %v484 = vadd.f32 %v228, %v434
  %v485 = vadd.f32 %v233, %v439
  %v486 = vadd.f32 %v238, %v444
  %v487 = vadd.f32 %v243, %v449
  %v488 = vadd.f32 %v248, %v454
  %v489 = vadd.f32 %v253, %v459
  %v490 = vadd.f32 %v258, %v464
  %v491 = vadd.f32 %v263, %v469
  %v492 = vadd.f32 %v268, %v474
  %v493 = vld [vmem:[%s1] sm:$0xff]
  %v494 = vld [vmem:[%s1 + $0x8] sm:$0xff]
  %v495 = vld [vmem:[%s1 + $0x10] sm:$0xff]
  %v496 = vld [vmem:[%s1 + $0x18] sm:$0xff]
  %v497 = vld [vmem:[%s1 + $0x20] sm:$0xff]
  %v498 = vld [vmem:[%s1 + $0x28] sm:$0xff]
  %v499 = vld [vmem:[%s1 + $0x30] sm:$0xff]
  %v500 = vld [vmem:[%s1 + $0x38] sm:$0xff]
  %v501 = vld [vmem:[%s1 + $0x40] sm:$0xff]
  %v502 = vld [vmem:[%s1 + $0x48] sm:$0xff]
  %v503 = vld [vmem:[%s1 + $0x50] sm:$0xff]
  %v504 = vld [vmem:[%s1 + $0x58] sm:$0xff]
  %505 = vmatprep.subr.mxu0 0.0
  %506 = vmatpush1.msra.mxu0 %v493
  %507 = vmatprep.subr.mxu0 0.0
  %508 = vmatpush1.msra.mxu0 %v494
  %509 = vmatprep.subr.mxu0 0.0
  %510 = vmatpush1.msra.mxu0 %v495
  %511 = vmatprep.subr.mxu0 0.0
  %512 = vmatpush1.msra.mxu0 %v496
  %513 = vmatprep.subr.mxu0 0.0
  %514 = vmatpush1.msra.mxu0 %v497
  %515 = vmatprep.subr.mxu0 0.0
  %516 = vmatpush1.msra.mxu0 %v498
  %517 = vmatprep.subr.mxu0 0.0
  %518 = vmatpush1.msra.mxu0 %v499
  %519 = vmatprep.subr.mxu0 0.0
  %520 = vmatpush1.msra.mxu0 %v500
  %521 = vmatprep.subr.mxu0 0.0
  %522 = vmatpush1.msra.mxu0 %v501
  %523 = vmatprep.subr.mxu0 0.0
  %524 = vmatpush1.msra.mxu0 %v502
  %525 = vmatprep.subr.mxu0 0.0
  %526 = vmatpush1.msra.mxu0 %v503
  %527 = vmatprep.subr.mxu0 0.0
  %528 = vmatpush1.msra.mxu0 %v504
  %529 = vmatprep.subr.mxu0 0.0
  %530 = vmatpush1.msra.mxu0 0.0
  %531 = vmatprep.subr.mxu0 0.0
  %532 = vmatpush1.msra.mxu0 0.0
  %533 = vmatprep.subr.mxu0 0.0
  %534 = vmatpush1.msra.mxu0 0.0
  %535 = vmatprep.subr.mxu0 0.0
  %536 = vmatpush1.msra.mxu0 0.0
  %537 = vmatprep.subr.mxu0 0.0
  %538 = vmatpush1.msra.mxu0 0.0
  %539 = vmatprep.subr.mxu0 0.0
  %540 = vmatpush1.msra.mxu0 0.0
  %541 = vmatprep.subr.mxu0 0.0
  %542 = vmatpush1.msra.mxu0 0.0
  %543 = vmatprep.subr.mxu0 0.0
  %544 = vmatpush1.msra.mxu0 0.0
  %545 = vmatprep.subr.mxu0 0.0
  %546 = vmatpush1.msra.mxu0 0.0
  %547 = vmatprep.subr.mxu0 0.0
  %548 = vmatpush1.msra.mxu0 0.0
  %549 = vmatprep.subr.mxu0 0.0
  %550 = vmatpush1.msra.mxu0 0.0
  %551 = vmatprep.subr.mxu0 0.0
  %552 = vmatpush1.msra.mxu0 0.0
  %553 = vmatprep.subr.mxu0 0.0
  %554 = vmatpush1.msra.mxu0 0.0
  %555 = vmatprep.subr.mxu0 0.0
  %556 = vmatpush1.msra.mxu0 0.0
  %557 = vmatprep.subr.mxu0 0.0
  %558 = vmatpush1.msra.mxu0 0.0
  %559 = vmatprep.subr.mxu0 0.0
  %560 = vmatpush1.msra.mxu0 0.0
  %561 = vmatprep.subr.mxu0 0.0
  %562 = vmatpush1.msra.mxu0 0.0
  %563 = vmatprep.subr.mxu0 0.0
  %564 = vmatpush1.msra.mxu0 0.0
  %565 = vmatprep.subr.mxu0 0.0
  %566 = vmatpush1.msra.mxu0 0.0
  %567 = vmatprep.subr.mxu0 0.0
  %568 = vmatpush1.msra.mxu0 0.0
  %569 = vmatprep.mubr.f32.mxu0 0.0
  %570 = vmatmul.mubr.f32.gmra.mrb[0].mxu0 %v285
  %v571 = vpop.f32.mrb[0].mxu0
  %v572 = vadd.f32 0.0, %v571
  %v573 = vpop.f32.mrb[0].mxu0
  %574 = vmatprep.mubr.f32.mxu0 0.0
  %575 = vmatmul.mubr.f32.gmra.mrb[0].mxu0 %v288
  %v576 = vpop.f32.mrb[0].mxu0
  %v577 = vadd.f32 0.0, %v576
  %v578 = vpop.f32.mrb[0].mxu0
  %579 = vmatprep.mubr.f32.mxu0 0.0
  %580 = vmatmul.mubr.f32.gmra.mrb[0].mxu0 %v291
  %v581 = vpop.f32.mrb[0].mxu0
  %v582 = vadd.f32 0.0, %v581
  %v583 = vpop.f32.mrb[0].mxu0
  %584 = vmatprep.mubr.f32.mxu0 0.0
  %585 = vmatmul.mubr.f32.gmra.mrb[0].mxu0 %v294
  %v586 = vpop.f32.mrb[0].mxu0
  %v587 = vadd.f32 0.0, %v586
  %v588 = vpop.f32.mrb[0].mxu0
  %589 = vmatprep.mubr.f32.mxu0 0.0
  %590 = vmatmul.mubr.f32.gmra.mrb[0].mxu0 %v297
  %v591 = vpop.f32.mrb[0].mxu0
  %v592 = vadd.f32 0.0, %v591
  %v593 = vpop.f32.mrb[0].mxu0
  %594 = vmatprep.mubr.f32.mxu0 0.0
  %595 = vmatmul.mubr.f32.gmra.mrb[0].mxu0 %v300
  %v596 = vpop.f32.mrb[0].mxu0
  %v597 = vadd.f32 0.0, %v596
  %v598 = vpop.f32.mrb[0].mxu0
  %599 = vmatprep.mubr.f32.mxu0 0.0
  %600 = vmatmul.mubr.f32.gmra.mrb[0].mxu0 %v303
  %v601 = vpop.f32.mrb[0].mxu0
  %v602 = vadd.f32 0.0, %v601
  %v603 = vpop.f32.mrb[0].mxu0
  %604 = vmatprep.mubr.f32.mxu0 0.0
  %605 = vmatmul.mubr.f32.gmra.mrb[0].mxu0 %v306
  %v606 = vpop.f32.mrb[0].mxu0
  %v607 = vadd.f32 0.0, %v606
  %v608 = vpop.f32.mrb[0].mxu0
  %609 = vmatprep.mubr.f32.mxu0 0.0
  %610 = vmatmul.mubr.f32.gmra.mrb[0].mxu0 %v309
  %v611 = vpop.f32.mrb[0].mxu0
  %v612 = vadd.f32 0.0, %v611
  %v613 = vpop.f32.mrb[0].mxu0
  %614 = vmatprep.mubr.f32.mxu0 0.0
  %615 = vmatmul.mubr.f32.gmra.mrb[0].mxu0 %v312
  %v616 = vpop.f32.mrb[0].mxu0
  %v617 = vadd.f32 0.0, %v616
  %v618 = vpop.f32.mrb[0].mxu0
  %619 = vmatprep.mubr.f32.mxu0 0.0
  %620 = vmatmul.mubr.f32.gmra.mrb[0].mxu0 %v315
  %v621 = vpop.f32.mrb[0].mxu0
  %v622 = vadd.f32 0.0, %v621
  %v623 = vpop.f32.mrb[0].mxu0
  %624 = vmatprep.mubr.f32.mxu0 0.0
  %625 = vmatmul.mubr.f32.gmra.mrb[0].mxu0 %v318
  %v626 = vpop.f32.mrb[0].mxu0
  %v627 = vadd.f32 0.0, %v626
  %v628 = vpop.f32.mrb[0].mxu0
  %629 = vmatprep.mubr.f32.mxu0 0.0
  %630 = vmatmul.mubr.f32.gmra.mrb[0].mxu0 %v321
  %v631 = vpop.f32.mrb[0].mxu0
  %v632 = vadd.f32 0.0, %v631
  %v633 = vpop.f32.mrb[0].mxu0
  %634 = vmatprep.mubr.f32.mxu0 0.0
  %635 = vmatmul.mubr.f32.gmra.mrb[0].mxu0 %v324
  %v636 = vpop.f32.mrb[0].mxu0
  %v637 = vadd.f32 0.0, %v636
  %v638 = vpop.f32.mrb[0].mxu0
  %639 = vmatprep.mubr.f32.mxu0 0.0
  %640 = vmatmul.mubr.f32.gmra.mrb[0].mxu0 %v327
  %v641 = vpop.f32.mrb[0].mxu0
  %v642 = vadd.f32 0.0, %v641
  %v643 = vpop.f32.mrb[0].mxu0
  %644 = vdwg.mxu0
  %v645 = vadd.f32 %v477, 0.0
  %v646 = vadd.f32 %v478, %v572
  %v647 = vadd.f32 %v479, %v577
  %v648 = vadd.f32 %v480, %v582
  %v649 = vadd.f32 %v481, %v587
  %v650 = vadd.f32 %v482, %v592
  %v651 = vadd.f32 %v483, %v597
  %v652 = vadd.f32 %v484, %v602
  %v653 = vadd.f32 %v485, %v607
  %v654 = vadd.f32 %v486, %v612
  %v655 = vadd.f32 %v487, %v617
  %v656 = vadd.f32 %v488, %v622
  %v657 = vadd.f32 %v489, %v627
  %v658 = vadd.f32 %v490, %v632
  %v659 = vadd.f32 %v491, %v637
  %v660 = vadd.f32 %v492, %v642
  %v661 = vld [vmem:[%s2] sm:$0x1]
  %v663 = vlaneseq
  %v664 = vshrl.u32 %v663, 7
  %v665 = vsub.s32 0, %v664
  %v666 = vrot.slane %v661, %v665
  %v668 = vadd.f32 %v645, %v666
  %v669 = vadd.f32 %v646, %v666
  %v670 = vadd.f32 %v647, %v666
  %v671 = vadd.f32 %v648, %v666
  %v672 = vadd.f32 %v649, %v666
  %v673 = vadd.f32 %v650, %v666
  %v674 = vadd.f32 %v651, %v666
  %v675 = vadd.f32 %v652, %v666
  %v676 = vadd.f32 %v653, %v666
  %v677 = vadd.f32 %v654, %v666
  %v678 = vadd.f32 %v655, %v666
  %v679 = vadd.f32 %v656, %v666
  %v680 = vadd.f32 %v657, %v666
  %v681 = vadd.f32 %v658, %v666
  %v682 = vadd.f32 %v659, %v666
  %v683 = vadd.f32 %v660, %v666
  %v684 = vmax.f32 %v668, 0.0
  %v685 = vmax.f32 %v669, 0.0
  %v686 = vmax.f32 %v670, 0.0
  %v687 = vmax.f32 %v671, 0.0
  %v688 = vmax.f32 %v672, 0.0
  %v689 = vmax.f32 %v673, 0.0
  %v690 = vmax.f32 %v674, 0.0
  %v691 = vmax.f32 %v675, 0.0
  %v692 = vmax.f32 %v676, 0.0
  %v693 = vmax.f32 %v677, 0.0
  %v694 = vmax.f32 %v678, 0.0
  %v695 = vmax.f32 %v679, 0.0
  %v696 = vmax.f32 %v680, 0.0
  %v697 = vmax.f32 %v681, 0.0
  %v698 = vmax.f32 %v682, 0.0
  %v699 = vmax.f32 %v683, 0.0
  %s700 = scalar_lea.vmem %s3, 64
  %v701 = vld [vmem:[%s700] sm:$0xff]
  %v702 = vld [vmem:[%s700 + $0x8] sm:$0xff]
  %v703 = vld [vmem:[%s700 + $0x10] sm:$0xff]
  %v704 = vld [vmem:[%s700 + $0x18] sm:$0xff]
  %v705 = vld [vmem:[%s700 + $0x20] sm:$0xff]
  %v706 = vld [vmem:[%s700 + $0x28] sm:$0xff]
  %v707 = vld [vmem:[%s700 + $0x30] sm:$0xff]
  %v708 = vld [vmem:[%s700 + $0x38] sm:$0xff]
  %vm709 = vcmask 523264
  %v711 = vsel %vm709, %v684, 0
  %v714 = vsel %vm709, %v686, 0
  %v717 = vsel %vm709, %v688, 0
  %v720 = vsel %vm709, %v690, 0
  %v723 = vsel %vm709, %v692, 0
  %v726 = vsel %vm709, %v694, 0
  %v729 = vsel %vm709, %v696, 0
  %v732 = vsel %vm709, %v698, 0
  %734 = vmatprep.subr.mxu0 0.0
  %735 = vmatpush1.msra.mxu0 %v701
  %736 = vmatprep.subr.mxu0 0.0
  %737 = vmatpush1.msra.mxu0 %v702
  %738 = vmatprep.subr.mxu0 0.0
  %739 = vmatpush1.msra.mxu0 %v703
  %740 = vmatprep.subr.mxu0 0.0
  %741 = vmatpush1.msra.mxu0 %v704
  %742 = vmatprep.subr.mxu0 0.0
  %743 = vmatpush1.msra.mxu0 %v705
  %744 = vmatprep.subr.mxu0 0.0
  %745 = vmatpush1.msra.mxu0 %v706
  %746 = vmatprep.subr.mxu0 0.0
  %747 = vmatpush1.msra.mxu0 %v707
  %748 = vmatprep.subr.mxu0 0.0
  %749 = vmatpush1.msra.mxu0 %v708
  %750 = vmatprep.subr.mxu0 0.0
  %751 = vmatpush1.msra.mxu0 0.0
  %752 = vmatprep.subr.mxu0 0.0
  %753 = vmatpush1.msra.mxu0 0.0
  %754 = vmatprep.subr.mxu0 0.0
  %755 = vmatpush1.msra.mxu0 0.0
  %756 = vmatprep.subr.mxu0 0.0
  %757 = vmatpush1.msra.mxu0 0.0
  %758 = vmatprep.subr.mxu0 0.0
  %759 = vmatpush1.msra.mxu0 0.0
  %760 = vmatprep.subr.mxu0 0.0
  %761 = vmatpush1.msra.mxu0 0.0
  %762 = vmatprep.subr.mxu0 0.0
  %763 = vmatpush1.msra.mxu0 0.0
  %764 = vmatprep.subr.mxu0 0.0
  %765 = vmatpush1.msra.mxu0 0.0
  %766 = vmatprep.subr.mxu0 0.0
  %767 = vmatpush1.msra.mxu0 0.0
  %768 = vmatprep.subr.mxu0 0.0
  %769 = vmatpush1.msra.mxu0 0.0
  %770 = vmatprep.subr.mxu0 0.0
  %771 = vmatpush1.msra.mxu0 0.0
  %772 = vmatprep.subr.mxu0 0.0
  %773 = vmatpush1.msra.mxu0 0.0
  %774 = vmatprep.subr.mxu0 0.0
  %775 = vmatpush1.msra.mxu0 0.0
  %776 = vmatprep.subr.mxu0 0.0
  %777 = vmatpush1.msra.mxu0 0.0
  %778 = vmatprep.subr.mxu0 0.0
  %779 = vmatpush1.msra.mxu0 0.0
  %780 = vmatprep.subr.mxu0 0.0
  %781 = vmatpush1.msra.mxu0 0.0
  %782 = vmatprep.subr.mxu0 0.0
  %783 = vmatpush1.msra.mxu0 0.0
  %784 = vmatprep.subr.mxu0 0.0
  %785 = vmatpush1.msra.mxu0 0.0
  %786 = vmatprep.subr.mxu0 0.0
  %787 = vmatpush1.msra.mxu0 0.0
  %788 = vmatprep.subr.mxu0 0.0
  %789 = vmatpush1.msra.mxu0 0.0
  %790 = vmatprep.subr.mxu0 0.0
  %791 = vmatpush1.msra.mxu0 0.0
  %792 = vmatprep.subr.mxu0 0.0
  %793 = vmatpush1.msra.mxu0 0.0
  %794 = vmatprep.subr.mxu0 0.0
  %795 = vmatpush1.msra.mxu0 0.0
  %796 = vmatprep.subr.mxu0 0.0
  %797 = vmatpush1.msra.mxu0 0.0
  %798 = vmatprep.mubr.f32.mxu0 0.0
  %799 = vmatmul.mubr.f32.gmra.mrb[0].mxu0 %v711
  %v800 = vpop.f32.mrb[0].mxu0
  %v801 = vadd.f32 0.0, %v800
  %v802 = vpop.f32.mrb[0].mxu0
  %803 = vmatprep.mubr.f32.mxu0 0.0
  %804 = vmatmul.mubr.f32.gmra.mrb[0].mxu0 %v714
  %v805 = vpop.f32.mrb[0].mxu0
  %v806 = vadd.f32 0.0, %v805
  %v807 = vpop.f32.mrb[0].mxu0
  %808 = vmatprep.mubr.f32.mxu0 0.0
  %809 = vmatmul.mubr.f32.gmra.mrb[0].mxu0 %v717
  %v810 = vpop.f32.mrb[0].mxu0
  %v811 = vadd.f32 0.0, %v810
  %v812 = vpop.f32.mrb[0].mxu0
  %813 = vmatprep.mubr.f32.mxu0 0.0
  %814 = vmatmul.mubr.f32.gmra.mrb[0].mxu0 %v720
  %v815 = vpop.f32.mrb[0].mxu0
  %v816 = vadd.f32 0.0, %v815
  %v817 = vpop.f32.mrb[0].mxu0
  %818 = vmatprep.mubr.f32.mxu0 0.0
  %819 = vmatmul.mubr.f32.gmra.mrb[0].mxu0 %v723
  %v820 = vpop.f32.mrb[0].mxu0
  %v821 = vadd.f32 0.0, %v820
  %v822 = vpop.f32.mrb[0].mxu0
  %823 = vmatprep.mubr.f32.mxu0 0.0
  %824 = vmatmul.mubr.f32.gmra.mrb[0].mxu0 %v726
  %v825 = vpop.f32.mrb[0].mxu0
  %v826 = vadd.f32 0.0, %v825
  %v827 = vpop.f32.mrb[0].mxu0
  %828 = vmatprep.mubr.f32.mxu0 0.0
  %829 = vmatmul.mubr.f32.gmra.mrb[0].mxu0 %v729
  %v830 = vpop.f32.mrb[0].mxu0
  %v831 = vadd.f32 0.0, %v830
  %v832 = vpop.f32.mrb[0].mxu0
  %833 = vmatprep.mubr.f32.mxu0 0.0
  %834 = vmatmul.mubr.f32.gmra.mrb[0].mxu0 %v732
  %v835 = vpop.f32.mrb[0].mxu0
  %v836 = vadd.f32 0.0, %v835
  %v837 = vpop.f32.mrb[0].mxu0
  %838 = vdwg.mxu0
  %s839 = scalar_lea.vmem %s3, 128
  %v840 = vld [vmem:[%s839] sm:$0xff]
  %v841 = vld [vmem:[%s839 + $0x8] sm:$0xff]
  %v842 = vld [vmem:[%s839 + $0x10] sm:$0xff]
  %v843 = vld [vmem:[%s839 + $0x18] sm:$0xff]
  %v844 = vld [vmem:[%s839 + $0x20] sm:$0xff]
  %v845 = vld [vmem:[%s839 + $0x28] sm:$0xff]
  %v846 = vld [vmem:[%s839 + $0x30] sm:$0xff]
  %v847 = vld [vmem:[%s839 + $0x38] sm:$0xff]
  %v849 = vsel %vm709, %v685, 0
  %v852 = vsel %vm709, %v687, 0
  %v855 = vsel %vm709, %v689, 0
  %v858 = vsel %vm709, %v691, 0
  %v861 = vsel %vm709, %v693, 0
  %v864 = vsel %vm709, %v695, 0
  %v867 = vsel %vm709, %v697, 0
  %v870 = vsel %vm709, %v699, 0
  %872 = vmatprep.subr.mxu0 0.0
  %873 = vmatpush1.msra.mxu0 %v840
  %874 = vmatprep.subr.mxu0 0.0
  %875 = vmatpush1.msra.mxu0 %v841
  %876 = vmatprep.subr.mxu0 0.0
  %877 = vmatpush1.msra.mxu0 %v842
  %878 = vmatprep.subr.mxu0 0.0
  %879 = vmatpush1.msra.mxu0 %v843
  %880 = vmatprep.subr.mxu0 0.0
  %881 = vmatpush1.msra.mxu0 %v844
  %882 = vmatprep.subr.mxu0 0.0
  %883 = vmatpush1.msra.mxu0 %v845
  %884 = vmatprep.subr.mxu0 0.0
  %885 = vmatpush1.msra.mxu0 %v846
  %886 = vmatprep.subr.mxu0 0.0
  %887 = vmatpush1.msra.mxu0 %v847
  %888 = vmatprep.subr.mxu0 0.0
  %889 = vmatpush1.msra.mxu0 0.0
  %890 = vmatprep.subr.mxu0 0.0
  %891 = vmatpush1.msra.mxu0 0.0
  %892 = vmatprep.subr.mxu0 0.0
  %893 = vmatpush1.msra.mxu0 0.0
  %894 = vmatprep.subr.mxu0 0.0
  %895 = vmatpush1.msra.mxu0 0.0
  %896 = vmatprep.subr.mxu0 0.0
  %897 = vmatpush1.msra.mxu0 0.0
  %898 = vmatprep.subr.mxu0 0.0
  %899 = vmatpush1.msra.mxu0 0.0
  %900 = vmatprep.subr.mxu0 0.0
  %901 = vmatpush1.msra.mxu0 0.0
  %902 = vmatprep.subr.mxu0 0.0
  %903 = vmatpush1.msra.mxu0 0.0
  %904 = vmatprep.subr.mxu0 0.0
  %905 = vmatpush1.msra.mxu0 0.0
  %906 = vmatprep.subr.mxu0 0.0
  %907 = vmatpush1.msra.mxu0 0.0
  %908 = vmatprep.subr.mxu0 0.0
  %909 = vmatpush1.msra.mxu0 0.0
  %910 = vmatprep.subr.mxu0 0.0
  %911 = vmatpush1.msra.mxu0 0.0
  %912 = vmatprep.subr.mxu0 0.0
  %913 = vmatpush1.msra.mxu0 0.0
  %914 = vmatprep.subr.mxu0 0.0
  %915 = vmatpush1.msra.mxu0 0.0
  %916 = vmatprep.subr.mxu0 0.0
  %917 = vmatpush1.msra.mxu0 0.0
  %918 = vmatprep.subr.mxu0 0.0
  %919 = vmatpush1.msra.mxu0 0.0
  %920 = vmatprep.subr.mxu0 0.0
  %921 = vmatpush1.msra.mxu0 0.0
  %922 = vmatprep.subr.mxu0 0.0
  %923 = vmatpush1.msra.mxu0 0.0
  %924 = vmatprep.subr.mxu0 0.0
  %925 = vmatpush1.msra.mxu0 0.0
  %926 = vmatprep.subr.mxu0 0.0
  %927 = vmatpush1.msra.mxu0 0.0
  %928 = vmatprep.subr.mxu0 0.0
  %929 = vmatpush1.msra.mxu0 0.0
  %930 = vmatprep.subr.mxu0 0.0
  %931 = vmatpush1.msra.mxu0 0.0
  %932 = vmatprep.subr.mxu0 0.0
  %933 = vmatpush1.msra.mxu0 0.0
  %934 = vmatprep.subr.mxu0 0.0
  %935 = vmatpush1.msra.mxu0 0.0
  %936 = vmatprep.mubr.f32.mxu0 0.0
  %937 = vmatmul.mubr.f32.gmra.mrb[0].mxu0 %v849
  %v938 = vpop.f32.mrb[0].mxu0
  %v939 = vadd.f32 0.0, %v938
  %v940 = vpop.f32.mrb[0].mxu0
  %941 = vmatprep.mubr.f32.mxu0 0.0
  %942 = vmatmul.mubr.f32.gmra.mrb[0].mxu0 %v852
  %v943 = vpop.f32.mrb[0].mxu0
  %v944 = vadd.f32 0.0, %v943
  %v945 = vpop.f32.mrb[0].mxu0
  %946 = vmatprep.mubr.f32.mxu0 0.0
  %947 = vmatmul.mubr.f32.gmra.mrb[0].mxu0 %v855
  %v948 = vpop.f32.mrb[0].mxu0
  %v949 = vadd.f32 0.0, %v948
  %v950 = vpop.f32.mrb[0].mxu0
  %951 = vmatprep.mubr.f32.mxu0 0.0
  %952 = vmatmul.mubr.f32.gmra.mrb[0].mxu0 %v858
  %v953 = vpop.f32.mrb[0].mxu0
  %v954 = vadd.f32 0.0, %v953
  %v955 = vpop.f32.mrb[0].mxu0
  %956 = vmatprep.mubr.f32.mxu0 0.0
  %957 = vmatmul.mubr.f32.gmra.mrb[0].mxu0 %v861
  %v958 = vpop.f32.mrb[0].mxu0
  %v959 = vadd.f32 0.0, %v958
  %v960 = vpop.f32.mrb[0].mxu0
  %961 = vmatprep.mubr.f32.mxu0 0.0
  %962 = vmatmul.mubr.f32.gmra.mrb[0].mxu0 %v864
  %v963 = vpop.f32.mrb[0].mxu0
  %v964 = vadd.f32 0.0, %v963
  %v965 = vpop.f32.mrb[0].mxu0
  %966 = vmatprep.mubr.f32.mxu0 0.0
  %967 = vmatmul.mubr.f32.gmra.mrb[0].mxu0 %v867
  %v968 = vpop.f32.mrb[0].mxu0
  %v969 = vadd.f32 0.0, %v968
  %v970 = vpop.f32.mrb[0].mxu0
  %971 = vmatprep.mubr.f32.mxu0 0.0
  %972 = vmatmul.mubr.f32.gmra.mrb[0].mxu0 %v870
  %v973 = vpop.f32.mrb[0].mxu0
  %v974 = vadd.f32 0.0, %v973
  %v975 = vpop.f32.mrb[0].mxu0
  %976 = vdwg.mxu0
  %v977 = vadd.f32 %v801, %v939
  %v978 = vadd.f32 %v806, %v944
  %v979 = vadd.f32 %v811, %v949
  %v980 = vadd.f32 %v816, %v954
  %v981 = vadd.f32 %v821, %v959
  %v982 = vadd.f32 %v826, %v964
  %v983 = vadd.f32 %v831, %v969
  %v984 = vadd.f32 %v836, %v974
  %v985 = vld [vmem:[%s3] sm:$0xff]
  %v986 = vld [vmem:[%s3 + $0x8] sm:$0xff]
  %v987 = vld [vmem:[%s3 + $0x10] sm:$0xff]
  %v988 = vld [vmem:[%s3 + $0x18] sm:$0xff]
  %v989 = vld [vmem:[%s3 + $0x20] sm:$0xff]
  %v990 = vld [vmem:[%s3 + $0x28] sm:$0xff]
  %v991 = vld [vmem:[%s3 + $0x30] sm:$0xff]
  %v992 = vld [vmem:[%s3 + $0x38] sm:$0xff]
  %993 = vmatprep.subr.mxu0 0.0
  %994 = vmatpush1.msra.mxu0 %v985
  %995 = vmatprep.subr.mxu0 0.0
  %996 = vmatpush1.msra.mxu0 %v986
  %997 = vmatprep.subr.mxu0 0.0
  %998 = vmatpush1.msra.mxu0 %v987
  %999 = vmatprep.subr.mxu0 0.0
  %1000 = vmatpush1.msra.mxu0 %v988
  %1001 = vmatprep.subr.mxu0 0.0
  %1002 = vmatpush1.msra.mxu0 %v989
  %1003 = vmatprep.subr.mxu0 0.0
  %1004 = vmatpush1.msra.mxu0 %v990
  %1005 = vmatprep.subr.mxu0 0.0
  %1006 = vmatpush1.msra.mxu0 %v991
  %1007 = vmatprep.subr.mxu0 0.0
  %1008 = vmatpush1.msra.mxu0 %v992
  %1009 = vmatprep.subr.mxu0 0.0
  %1010 = vmatpush1.msra.mxu0 0.0
  %1011 = vmatprep.subr.mxu0 0.0
  %1012 = vmatpush1.msra.mxu0 0.0
  %1013 = vmatprep.subr.mxu0 0.0
  %1014 = vmatpush1.msra.mxu0 0.0
  %1015 = vmatprep.subr.mxu0 0.0
  %1016 = vmatpush1.msra.mxu0 0.0
  %1017 = vmatprep.subr.mxu0 0.0
  %1018 = vmatpush1.msra.mxu0 0.0
  %1019 = vmatprep.subr.mxu0 0.0
  %1020 = vmatpush1.msra.mxu0 0.0
  %1021 = vmatprep.subr.mxu0 0.0
  %1022 = vmatpush1.msra.mxu0 0.0
  %1023 = vmatprep.subr.mxu0 0.0
  %1024 = vmatpush1.msra.mxu0 0.0
  %1025 = vmatprep.subr.mxu0 0.0
  %1026 = vmatpush1.msra.mxu0 0.0
  %1027 = vmatprep.subr.mxu0 0.0
  %1028 = vmatpush1.msra.mxu0 0.0
  %1029 = vmatprep.subr.mxu0 0.0
  %1030 = vmatpush1.msra.mxu0 0.0
  %1031 = vmatprep.subr.mxu0 0.0
  %1032 = vmatpush1.msra.mxu0 0.0
  %1033 = vmatprep.subr.mxu0 0.0
  %1034 = vmatpush1.msra.mxu0 0.0
  %1035 = vmatprep.subr.mxu0 0.0
  %1036 = vmatpush1.msra.mxu0 0.0
  %1037 = vmatprep.subr.mxu0 0.0
  %1038 = vmatpush1.msra.mxu0 0.0
  %1039 = vmatprep.subr.mxu0 0.0
  %1040 = vmatpush1.msra.mxu0 0.0
  %1041 = vmatprep.subr.mxu0 0.0
  %1042 = vmatpush1.msra.mxu0 0.0
  %1043 = vmatprep.subr.mxu0 0.0
  %1044 = vmatpush1.msra.mxu0 0.0
  %1045 = vmatprep.subr.mxu0 0.0
  %1046 = vmatpush1.msra.mxu0 0.0
  %1047 = vmatprep.subr.mxu0 0.0
  %1048 = vmatpush1.msra.mxu0 0.0
  %1049 = vmatprep.subr.mxu0 0.0
  %1050 = vmatpush1.msra.mxu0 0.0
  %1051 = vmatprep.subr.mxu0 0.0
  %1052 = vmatpush1.msra.mxu0 0.0
  %1053 = vmatprep.subr.mxu0 0.0
  %1054 = vmatpush1.msra.mxu0 0.0
  %1055 = vmatprep.subr.mxu0 0.0
  %1056 = vmatpush1.msra.mxu0 0.0
  %1057 = vmatprep.mubr.f32.mxu0 0.0
  %1058 = vmatmul.mubr.f32.gmra.mrb[0].mxu0 %v849
  %v1059 = vpop.f32.mrb[0].mxu0
  %v1060 = vadd.f32 0.0, %v1059
  %v1061 = vpop.f32.mrb[0].mxu0
  %1062 = vmatprep.mubr.f32.mxu0 0.0
  %1063 = vmatmul.mubr.f32.gmra.mrb[0].mxu0 %v852
  %v1064 = vpop.f32.mrb[0].mxu0
  %v1065 = vadd.f32 0.0, %v1064
  %v1066 = vpop.f32.mrb[0].mxu0
  %1067 = vmatprep.mubr.f32.mxu0 0.0
  %1068 = vmatmul.mubr.f32.gmra.mrb[0].mxu0 %v855
  %v1069 = vpop.f32.mrb[0].mxu0
  %v1070 = vadd.f32 0.0, %v1069
  %v1071 = vpop.f32.mrb[0].mxu0
  %1072 = vmatprep.mubr.f32.mxu0 0.0
  %1073 = vmatmul.mubr.f32.gmra.mrb[0].mxu0 %v858
  %v1074 = vpop.f32.mrb[0].mxu0
  %v1075 = vadd.f32 0.0, %v1074
  %v1076 = vpop.f32.mrb[0].mxu0
  %1077 = vmatprep.mubr.f32.mxu0 0.0
  %1078 = vmatmul.mubr.f32.gmra.mrb[0].mxu0 %v861
  %v1079 = vpop.f32.mrb[0].mxu0
  %v1080 = vadd.f32 0.0, %v1079
  %v1081 = vpop.f32.mrb[0].mxu0
  %1082 = vmatprep.mubr.f32.mxu0 0.0
  %1083 = vmatmul.mubr.f32.gmra.mrb[0].mxu0 %v864
  %v1084 = vpop.f32.mrb[0].mxu0
  %v1085 = vadd.f32 0.0, %v1084
  %v1086 = vpop.f32.mrb[0].mxu0
  %1087 = vmatprep.mubr.f32.mxu0 0.0
  %1088 = vmatmul.mubr.f32.gmra.mrb[0].mxu0 %v867
  %v1089 = vpop.f32.mrb[0].mxu0
  %v1090 = vadd.f32 0.0, %v1089
  %v1091 = vpop.f32.mrb[0].mxu0
  %1092 = vdwg.mxu0
  %v1093 = vadd.f32 %v977, 0.0
  %v1094 = vadd.f32 %v978, %v1060
  %v1095 = vadd.f32 %v979, %v1065
  %v1096 = vadd.f32 %v980, %v1070
  %v1097 = vadd.f32 %v981, %v1075
  %v1098 = vadd.f32 %v982, %v1080
  %v1099 = vadd.f32 %v983, %v1085
  %v1100 = vadd.f32 %v984, %v1090
  %v1101 = vld [vmem:[%s4] sm:$0x1]
  %v1103 = vlaneseq
  %v1104 = vshrl.u32 %v1103, 7
  %v1105 = vsub.s32 0, %v1104
  %v1106 = vrot.slane %v1101, %v1105
  %v1108 = vadd.f32 %v1093, %v1106
  %v1109 = vadd.f32 %v1094, %v1106
  %v1110 = vadd.f32 %v1095, %v1106
  %v1111 = vadd.f32 %v1096, %v1106
  %v1112 = vadd.f32 %v1097, %v1106
  %v1113 = vadd.f32 %v1098, %v1106
  %v1114 = vadd.f32 %v1099, %v1106
  %v1115 = vadd.f32 %v1100, %v1106
  %v1116 = vmax.f32 %v1108, 0.0
  %v1117 = vmax.f32 %v1109, 0.0
  %v1118 = vmax.f32 %v1110, 0.0
  %v1119 = vmax.f32 %v1111, 0.0
  %v1120 = vmax.f32 %v1112, 0.0
  %v1121 = vmax.f32 %v1113, 0.0
  %v1122 = vmax.f32 %v1114, 0.0
  %v1123 = vmax.f32 %v1115, 0.0
  %s1124 = scalar_lea.vmem %s5, 32
  %v1125 = vld [vmem:[%s1124] sm:$0xff]
  %v1126 = vld [vmem:[%s1124 + $0x8] sm:$0xff]
  %v1127 = vld [vmem:[%s1124 + $0x10] sm:$0xff]
  %v1128 = vld [vmem:[%s1124 + $0x18] sm:$0xff]
  %vm1129 = vcmask 261120
  %v1131 = vsel %vm1129, %v1116, 0
  %v1134 = vsel %vm1129, %v1118, 0
  %v1137 = vsel %vm1129, %v1120, 0
  %v1140 = vsel %vm1129, %v1122, 0
  %1142 = vmatprep.subr.mxu0 0.0
  %1143 = vmatpush1.msra.mxu0 %v1125
  %1144 = vmatprep.subr.mxu0 0.0
  %1145 = vmatpush1.msra.mxu0 %v1126
  %1146 = vmatprep.subr.mxu0 0.0
  %1147 = vmatpush1.msra.mxu0 %v1127
  %1148 = vmatprep.subr.mxu0 0.0
  %1149 = vmatpush1.msra.mxu0 %v1128
  %1150 = vmatprep.subr.mxu0 0.0
  %1151 = vmatpush1.msra.mxu0 0.0
  %1152 = vmatprep.subr.mxu0 0.0
  %1153 = vmatpush1.msra.mxu0 0.0
  %1154 = vmatprep.subr.mxu0 0.0
  %1155 = vmatpush1.msra.mxu0 0.0
  %1156 = vmatprep.subr.mxu0 0.0
  %1157 = vmatpush1.msra.mxu0 0.0
  %1158 = vmatprep.subr.mxu0 0.0
  %1159 = vmatpush1.msra.mxu0 0.0
  %1160 = vmatprep.subr.mxu0 0.0
  %1161 = vmatpush1.msra.mxu0 0.0
  %1162 = vmatprep.subr.mxu0 0.0
  %1163 = vmatpush1.msra.mxu0 0.0
  %1164 = vmatprep.subr.mxu0 0.0
  %1165 = vmatpush1.msra.mxu0 0.0
  %1166 = vmatprep.subr.mxu0 0.0
  %1167 = vmatpush1.msra.mxu0 0.0
  %1168 = vmatprep.subr.mxu0 0.0
  %1169 = vmatpush1.msra.mxu0 0.0
  %1170 = vmatprep.subr.mxu0 0.0
  %1171 = vmatpush1.msra.mxu0 0.0
  %1172 = vmatprep.subr.mxu0 0.0
  %1173 = vmatpush1.msra.mxu0 0.0
  %1174 = vmatprep.subr.mxu0 0.0
  %1175 = vmatpush1.msra.mxu0 0.0
  %1176 = vmatprep.subr.mxu0 0.0
  %1177 = vmatpush1.msra.mxu0 0.0
  %1178 = vmatprep.subr.mxu0 0.0
  %1179 = vmatpush1.msra.mxu0 0.0
  %1180 = vmatprep.subr.mxu0 0.0
  %1181 = vmatpush1.msra.mxu0 0.0
  %1182 = vmatprep.subr.mxu0 0.0
  %1183 = vmatpush1.msra.mxu0 0.0
  %1184 = vmatprep.subr.mxu0 0.0
  %1185 = vmatpush1.msra.mxu0 0.0
  %1186 = vmatprep.subr.mxu0 0.0
  %1187 = vmatpush1.msra.mxu0 0.0
  %1188 = vmatprep.subr.mxu0 0.0
  %1189 = vmatpush1.msra.mxu0 0.0
  %1190 = vmatprep.subr.mxu0 0.0
  %1191 = vmatpush1.msra.mxu0 0.0
  %1192 = vmatprep.subr.mxu0 0.0
  %1193 = vmatpush1.msra.mxu0 0.0
  %1194 = vmatprep.subr.mxu0 0.0
  %1195 = vmatpush1.msra.mxu0 0.0
  %1196 = vmatprep.subr.mxu0 0.0
  %1197 = vmatpush1.msra.mxu0 0.0
  %1198 = vmatprep.subr.mxu0 0.0
  %1199 = vmatpush1.msra.mxu0 0.0
  %1200 = vmatprep.subr.mxu0 0.0
  %1201 = vmatpush1.msra.mxu0 0.0
  %1202 = vmatprep.subr.mxu0 0.0
  %1203 = vmatpush1.msra.mxu0 0.0
  %1204 = vmatprep.subr.mxu0 0.0
  %1205 = vmatpush1.msra.mxu0 0.0
  %1206 = vmatprep.mubr.f32.mxu0 0.0
  %1207 = vmatmul.mubr.f32.gmra.mrb[0].mxu0 %v1131
  %v1208 = vpop.f32.mrb[0].mxu0
  %v1209 = vadd.f32 0.0, %v1208
  %v1210 = vpop.f32.mrb[0].mxu0
  %1211 = vmatprep.mubr.f32.mxu0 0.0
  %1212 = vmatmul.mubr.f32.gmra.mrb[0].mxu0 %v1134
  %v1213 = vpop.f32.mrb[0].mxu0
  %v1214 = vadd.f32 0.0, %v1213
  %v1215 = vpop.f32.mrb[0].mxu0
  %1216 = vmatprep.mubr.f32.mxu0 0.0
  %1217 = vmatmul.mubr.f32.gmra.mrb[0].mxu0 %v1137
  %v1218 = vpop.f32.mrb[0].mxu0
  %v1219 = vadd.f32 0.0, %v1218
  %v1220 = vpop.f32.mrb[0].mxu0
  %1221 = vmatprep.mubr.f32.mxu0 0.0
  %1222 = vmatmul.mubr.f32.gmra.mrb[0].mxu0 %v1140
  %v1223 = vpop.f32.mrb[0].mxu0
  %v1224 = vadd.f32 0.0, %v1223
  %v1225 = vpop.f32.mrb[0].mxu0
  %1226 = vdwg.mxu0
  %s1227 = scalar_lea.vmem %s5, 64
  %v1228 = vld [vmem:[%s1227] sm:$0xff]
  %v1229 = vld [vmem:[%s1227 + $0x8] sm:$0xff]
  %v1230 = vld [vmem:[%s1227 + $0x10] sm:$0xff]
  %v1231 = vld [vmem:[%s1227 + $0x18] sm:$0xff]
  %v1233 = vsel %vm1129, %v1117, 0
  %v1236 = vsel %vm1129, %v1119, 0
  %v1239 = vsel %vm1129, %v1121, 0
  %v1242 = vsel %vm1129, %v1123, 0
  %1244 = vmatprep.subr.mxu0 0.0
  %1245 = vmatpush1.msra.mxu0 %v1228
  %1246 = vmatprep.subr.mxu0 0.0
  %1247 = vmatpush1.msra.mxu0 %v1229
  %1248 = vmatprep.subr.mxu0 0.0
  %1249 = vmatpush1.msra.mxu0 %v1230
  %1250 = vmatprep.subr.mxu0 0.0
  %1251 = vmatpush1.msra.mxu0 %v1231
  %1252 = vmatprep.subr.mxu0 0.0
  %1253 = vmatpush1.msra.mxu0 0.0
  %1254 = vmatprep.subr.mxu0 0.0
  %1255 = vmatpush1.msra.mxu0 0.0
  %1256 = vmatprep.subr.mxu0 0.0
  %1257 = vmatpush1.msra.mxu0 0.0
  %1258 = vmatprep.subr.mxu0 0.0
  %1259 = vmatpush1.msra.mxu0 0.0
  %1260 = vmatprep.subr.mxu0 0.0
  %1261 = vmatpush1.msra.mxu0 0.0
  %1262 = vmatprep.subr.mxu0 0.0
  %1263 = vmatpush1.msra.mxu0 0.0
  %1264 = vmatprep.subr.mxu0 0.0
  %1265 = vmatpush1.msra.mxu0 0.0
  %1266 = vmatprep.subr.mxu0 0.0
  %1267 = vmatpush1.msra.mxu0 0.0
  %1268 = vmatprep.subr.mxu0 0.0
  %1269 = vmatpush1.msra.mxu0 0.0
  %1270 = vmatprep.subr.mxu0 0.0
  %1271 = vmatpush1.msra.mxu0 0.0
  %1272 = vmatprep.subr.mxu0 0.0
  %1273 = vmatpush1.msra.mxu0 0.0
  %1274 = vmatprep.subr.mxu0 0.0
  %1275 = vmatpush1.msra.mxu0 0.0
  %1276 = vmatprep.subr.mxu0 0.0
  %1277 = vmatpush1.msra.mxu0 0.0
  %1278 = vmatprep.subr.mxu0 0.0
  %1279 = vmatpush1.msra.mxu0 0.0
  %1280 = vmatprep.subr.mxu0 0.0
  %1281 = vmatpush1.msra.mxu0 0.0
  %1282 = vmatprep.subr.mxu0 0.0
  %1283 = vmatpush1.msra.mxu0 0.0
  %1284 = vmatprep.subr.mxu0 0.0
  %1285 = vmatpush1.msra.mxu0 0.0
  %1286 = vmatprep.subr.mxu0 0.0
  %1287 = vmatpush1.msra.mxu0 0.0
  %1288 = vmatprep.subr.mxu0 0.0
  %1289 = vmatpush1.msra.mxu0 0.0
  %1290 = vmatprep.subr.mxu0 0.0
  %1291 = vmatpush1.msra.mxu0 0.0
  %1292 = vmatprep.subr.mxu0 0.0
  %1293 = vmatpush1.msra.mxu0 0.0
  %1294 = vmatprep.subr.mxu0 0.0
  %1295 = vmatpush1.msra.mxu0 0.0
  %1296 = vmatprep.subr.mxu0 0.0
  %1297 = vmatpush1.msra.mxu0 0.0
  %1298 = vmatprep.subr.mxu0 0.0
  %1299 = vmatpush1.msra.mxu0 0.0
  %1300 = vmatprep.subr.mxu0 0.0
  %1301 = vmatpush1.msra.mxu0 0.0
  %1302 = vmatprep.subr.mxu0 0.0
  %1303 = vmatpush1.msra.mxu0 0.0
  %1304 = vmatprep.subr.mxu0 0.0
  %1305 = vmatpush1.msra.mxu0 0.0
  %1306 = vmatprep.subr.mxu0 0.0
  %1307 = vmatpush1.msra.mxu0 0.0
  %1308 = vmatprep.mubr.f32.mxu0 0.0
  %1309 = vmatmul.mubr.f32.gmra.mrb[0].mxu0 %v1233
  %v1310 = vpop.f32.mrb[0].mxu0
  %v1311 = vadd.f32 0.0, %v1310
  %v1312 = vpop.f32.mrb[0].mxu0
  %1313 = vmatprep.mubr.f32.mxu0 0.0
  %1314 = vmatmul.mubr.f32.gmra.mrb[0].mxu0 %v1236
  %v1315 = vpop.f32.mrb[0].mxu0
  %v1316 = vadd.f32 0.0, %v1315
  %v1317 = vpop.f32.mrb[0].mxu0
  %1318 = vmatprep.mubr.f32.mxu0 0.0
  %1319 = vmatmul.mubr.f32.gmra.mrb[0].mxu0 %v1239
  %v1320 = vpop.f32.mrb[0].mxu0
  %v1321 = vadd.f32 0.0, %v1320
  %v1322 = vpop.f32.mrb[0].mxu0
  %1323 = vmatprep.mubr.f32.mxu0 0.0
  %1324 = vmatmul.mubr.f32.gmra.mrb[0].mxu0 %v1242
  %v1325 = vpop.f32.mrb[0].mxu0
  %v1326 = vadd.f32 0.0, %v1325
  %v1327 = vpop.f32.mrb[0].mxu0
  %1328 = vdwg.mxu0
  %v1329 = vadd.f32 %v1209, %v1311
  %v1330 = vadd.f32 %v1214, %v1316
  %v1331 = vadd.f32 %v1219, %v1321
  %v1332 = vadd.f32 %v1224, %v1326
  %v1333 = vld [vmem:[%s5] sm:$0xff]
  %v1334 = vld [vmem:[%s5 + $0x8] sm:$0xff]
  %v1335 = vld [vmem:[%s5 + $0x10] sm:$0xff]
  %v1336 = vld [vmem:[%s5 + $0x18] sm:$0xff]
  %1337 = vmatprep.subr.mxu0 0.0
  %1338 = vmatpush1.msra.mxu0 %v1333
  %1339 = vmatprep.subr.mxu0 0.0
  %1340 = vmatpush1.msra.mxu0 %v1334
  %1341 = vmatprep.subr.mxu0 0.0
  %1342 = vmatpush1.msra.mxu0 %v1335
  %1343 = vmatprep.subr.mxu0 0.0
  %1344 = vmatpush1.msra.mxu0 %v1336
  %1345 = vmatprep.subr.mxu0 0.0
  %1346 = vmatpush1.msra.mxu0 0.0
  %1347 = vmatprep.subr.mxu0 0.0
  %1348 = vmatpush1.msra.mxu0 0.0
  %1349 = vmatprep.subr.mxu0 0.0
  %1350 = vmatpush1.msra.mxu0 0.0
  %1351 = vmatprep.subr.mxu0 0.0
  %1352 = vmatpush1.msra.mxu0 0.0
  %1353 = vmatprep.subr.mxu0 0.0
  %1354 = vmatpush1.msra.mxu0 0.0
  %1355 = vmatprep.subr.mxu0 0.0
  %1356 = vmatpush1.msra.mxu0 0.0
  %1357 = vmatprep.subr.mxu0 0.0
  %1358 = vmatpush1.msra.mxu0 0.0
  %1359 = vmatprep.subr.mxu0 0.0
  %1360 = vmatpush1.msra.mxu0 0.0
  %1361 = vmatprep.subr.mxu0 0.0
  %1362 = vmatpush1.msra.mxu0 0.0
  %1363 = vmatprep.subr.mxu0 0.0
  %1364 = vmatpush1.msra.mxu0 0.0
  %1365 = vmatprep.subr.mxu0 0.0
  %1366 = vmatpush1.msra.mxu0 0.0
  %1367 = vmatprep.subr.mxu0 0.0
  %1368 = vmatpush1.msra.mxu0 0.0
  %1369 = vmatprep.subr.mxu0 0.0
  %1370 = vmatpush1.msra.mxu0 0.0
  %1371 = vmatprep.subr.mxu0 0.0
  %1372 = vmatpush1.msra.mxu0 0.0
  %1373 = vmatprep.subr.mxu0 0.0
  %1374 = vmatpush1.msra.mxu0 0.0
  %1375 = vmatprep.subr.mxu0 0.0
  %1376 = vmatpush1.msra.mxu0 0.0
  %1377 = vmatprep.subr.mxu0 0.0
  %1378 = vmatpush1.msra.mxu0 0.0
  %1379 = vmatprep.subr.mxu0 0.0
  %1380 = vmatpush1.msra.mxu0 0.0
  %1381 = vmatprep.subr.mxu0 0.0
  %1382 = vmatpush1.msra.mxu0 0.0
  %1383 = vmatprep.subr.mxu0 0.0
  %1384 = vmatpush1.msra.mxu0 0.0
  %1385 = vmatprep.subr.mxu0 0.0
  %1386 = vmatpush1.msra.mxu0 0.0
  %1387 = vmatprep.subr.mxu0 0.0
  %1388 = vmatpush1.msra.mxu0 0.0
  %1389 = vmatprep.subr.mxu0 0.0
  %1390 = vmatpush1.msra.mxu0 0.0
  %1391 = vmatprep.subr.mxu0 0.0
  %1392 = vmatpush1.msra.mxu0 0.0
  %1393 = vmatprep.subr.mxu0 0.0
  %1394 = vmatpush1.msra.mxu0 0.0
  %1395 = vmatprep.subr.mxu0 0.0
  %1396 = vmatpush1.msra.mxu0 0.0
  %1397 = vmatprep.subr.mxu0 0.0
  %1398 = vmatpush1.msra.mxu0 0.0
  %1399 = vmatprep.subr.mxu0 0.0
  %1400 = vmatpush1.msra.mxu0 0.0
  %1401 = vmatprep.mubr.f32.mxu0 0.0
  %1402 = vmatmul.mubr.f32.gmra.mrb[0].mxu0 %v1233
  %v1403 = vpop.f32.mrb[0].mxu0
  %v1404 = vadd.f32 0.0, %v1403
  %v1405 = vpop.f32.mrb[0].mxu0
  %1406 = vmatprep.mubr.f32.mxu0 0.0
  %1407 = vmatmul.mubr.f32.gmra.mrb[0].mxu0 %v1236
  %v1408 = vpop.f32.mrb[0].mxu0
  %v1409 = vadd.f32 0.0, %v1408
  %v1410 = vpop.f32.mrb[0].mxu0
  %1411 = vmatprep.mubr.f32.mxu0 0.0
  %1412 = vmatmul.mubr.f32.gmra.mrb[0].mxu0 %v1239
  %v1413 = vpop.f32.mrb[0].mxu0
  %v1414 = vadd.f32 0.0, %v1413
  %v1415 = vpop.f32.mrb[0].mxu0
  %1416 = vdwg.mxu0
  %v1417 = vadd.f32 %v1329, 0.0
  %v1418 = vadd.f32 %v1330, %v1404
  %v1419 = vadd.f32 %v1331, %v1409
  %v1420 = vadd.f32 %v1332, %v1414
  %v1421 = vld [vmem:[%s6] sm:$0x1]
  %v1423 = vlaneseq
  %v1424 = vshrl.u32 %v1423, 7
  %v1425 = vsub.s32 0, %v1424
  %v1426 = vrot.slane %v1421, %v1425
  %v1428 = vadd.f32 %v1417, %v1426
  %v1429 = vadd.f32 %v1418, %v1426
  %v1430 = vadd.f32 %v1419, %v1426
  %v1431 = vadd.f32 %v1420, %v1426
  %v1432 = vmax.f32 %v1428, 0.0
  %v1433 = vmax.f32 %v1429, 0.0
  %v1434 = vmax.f32 %v1430, 0.0
  %v1435 = vmax.f32 %v1431, 0.0
  %v1436 = vld [vmem:[%s7] sm:$0xff]
  %v1437 = vld [vmem:[%s7 + $0x8] sm:$0xff]
  %s1438 = scalar_lea.vmem %s7, 16
  %v1439 = vld [vmem:[%s1438] sm:$0xff]
  %v1440 = vld [vmem:[%s1438 + $0x8] sm:$0xff]
  %vm1441 = vcmask 130048
  %v1443 = vsel %vm1441, %v1433, 0
  %1445 = vmatprep.subr.mxu0 0.0
  %1446 = vmatpush1.msra.mxu0 %v1439
  %1447 = vmatprep.subr.mxu0 0.0
  %1448 = vmatpush1.msra.mxu0 %v1440
  %1449 = vmatprep.subr.mxu0 0.0
  %1450 = vmatpush1.msra.mxu0 0.0
  %1451 = vmatprep.subr.mxu0 0.0
  %1452 = vmatpush1.msra.mxu0 0.0
  %1453 = vmatprep.subr.mxu0 0.0
  %1454 = vmatpush1.msra.mxu0 0.0
  %1455 = vmatprep.subr.mxu0 0.0
  %1456 = vmatpush1.msra.mxu0 0.0
  %1457 = vmatprep.subr.mxu0 0.0
  %1458 = vmatpush1.msra.mxu0 0.0
  %1459 = vmatprep.subr.mxu0 0.0
  %1460 = vmatpush1.msra.mxu0 0.0
  %1461 = vmatprep.subr.mxu0 0.0
  %1462 = vmatpush1.msra.mxu0 0.0
  %1463 = vmatprep.subr.mxu0 0.0
  %1464 = vmatpush1.msra.mxu0 0.0
  %1465 = vmatprep.subr.mxu0 0.0
  %1466 = vmatpush1.msra.mxu0 0.0
  %1467 = vmatprep.subr.mxu0 0.0
  %1468 = vmatpush1.msra.mxu0 0.0
  %1469 = vmatprep.subr.mxu0 0.0
  %1470 = vmatpush1.msra.mxu0 0.0
  %1471 = vmatprep.subr.mxu0 0.0
  %1472 = vmatpush1.msra.mxu0 0.0
  %1473 = vmatprep.subr.mxu0 0.0
  %1474 = vmatpush1.msra.mxu0 0.0
  %1475 = vmatprep.subr.mxu0 0.0
  %1476 = vmatpush1.msra.mxu0 0.0
  %1477 = vmatprep.subr.mxu0 0.0
  %1478 = vmatpush1.msra.mxu0 0.0
  %1479 = vmatprep.subr.mxu0 0.0
  %1480 = vmatpush1.msra.mxu0 0.0
  %1481 = vmatprep.subr.mxu0 0.0
  %1482 = vmatpush1.msra.mxu0 0.0
  %1483 = vmatprep.subr.mxu0 0.0
  %1484 = vmatpush1.msra.mxu0 0.0
  %1485 = vmatprep.subr.mxu0 0.0
  %1486 = vmatpush1.msra.mxu0 0.0
  %1487 = vmatprep.subr.mxu0 0.0
  %1488 = vmatpush1.msra.mxu0 0.0
  %1489 = vmatprep.subr.mxu0 0.0
  %1490 = vmatpush1.msra.mxu0 0.0
  %1491 = vmatprep.subr.mxu0 0.0
  %1492 = vmatpush1.msra.mxu0 0.0
  %1493 = vmatprep.subr.mxu0 0.0
  %1494 = vmatpush1.msra.mxu0 0.0
  %1495 = vmatprep.subr.mxu0 0.0
  %1496 = vmatpush1.msra.mxu0 0.0
  %1497 = vmatprep.subr.mxu0 0.0
  %1498 = vmatpush1.msra.mxu0 0.0
  %1499 = vmatprep.subr.mxu0 0.0
  %1500 = vmatpush1.msra.mxu0 0.0
  %1501 = vmatprep.subr.mxu0 0.0
  %1502 = vmatpush1.msra.mxu0 0.0
  %1503 = vmatprep.subr.mxu0 0.0
  %1504 = vmatpush1.msra.mxu0 0.0
  %1505 = vmatprep.subr.mxu0 0.0
  %1506 = vmatpush1.msra.mxu0 0.0
  %1507 = vmatprep.subr.mxu0 0.0
  %1508 = vmatpush1.msra.mxu0 0.0
  %1509 = vmatprep.mubr.f32.mxu0 0.0
  %1510 = vmatmul.mubr.f32.gmra.mrb[0].mxu0 %v1443
  %v1511 = vpop.f32.mrb[0].mxu0
  %v1512 = vadd.f32 0.0, %v1511
  %v1513 = vpop.f32.mrb[0].mxu0
  %1514 = vdwg.mxu0
  %v1516 = vsel %vm1441, %v1432, 0
  %1518 = vmatprep.subr.mxu0 0.0
  %1519 = vmatpush1.msra.mxu0 %v1436
  %1520 = vmatprep.subr.mxu0 0.0
  %1521 = vmatpush1.msra.mxu0 %v1437
  %1522 = vmatprep.subr.mxu0 0.0
  %1523 = vmatpush1.msra.mxu0 0.0
  %1524 = vmatprep.subr.mxu0 0.0
  %1525 = vmatpush1.msra.mxu0 0.0
  %1526 = vmatprep.subr.mxu0 0.0
  %1527 = vmatpush1.msra.mxu0 0.0
  %1528 = vmatprep.subr.mxu0 0.0
  %1529 = vmatpush1.msra.mxu0 0.0
  %1530 = vmatprep.subr.mxu0 0.0
  %1531 = vmatpush1.msra.mxu0 0.0
  %1532 = vmatprep.subr.mxu0 0.0
  %1533 = vmatpush1.msra.mxu0 0.0
  %1534 = vmatprep.subr.mxu0 0.0
  %1535 = vmatpush1.msra.mxu0 0.0
  %1536 = vmatprep.subr.mxu0 0.0
  %1537 = vmatpush1.msra.mxu0 0.0
  %1538 = vmatprep.subr.mxu0 0.0
  %1539 = vmatpush1.msra.mxu0 0.0
  %1540 = vmatprep.subr.mxu0 0.0
  %1541 = vmatpush1.msra.mxu0 0.0
  %1542 = vmatprep.subr.mxu0 0.0
  %1543 = vmatpush1.msra.mxu0 0.0
  %1544 = vmatprep.subr.mxu0 0.0
  %1545 = vmatpush1.msra.mxu0 0.0
  %1546 = vmatprep.subr.mxu0 0.0
  %1547 = vmatpush1.msra.mxu0 0.0
  %1548 = vmatprep.subr.mxu0 0.0
  %1549 = vmatpush1.msra.mxu0 0.0
  %1550 = vmatprep.subr.mxu0 0.0
  %1551 = vmatpush1.msra.mxu0 0.0
  %1552 = vmatprep.subr.mxu0 0.0
  %1553 = vmatpush1.msra.mxu0 0.0
  %1554 = vmatprep.subr.mxu0 0.0
  %1555 = vmatpush1.msra.mxu0 0.0
  %1556 = vmatprep.subr.mxu0 0.0
  %1557 = vmatpush1.msra.mxu0 0.0
  %1558 = vmatprep.subr.mxu0 0.0
  %1559 = vmatpush1.msra.mxu0 0.0
  %1560 = vmatprep.subr.mxu0 0.0
  %1561 = vmatpush1.msra.mxu0 0.0
  %1562 = vmatprep.subr.mxu0 0.0
  %1563 = vmatpush1.msra.mxu0 0.0
  %1564 = vmatprep.subr.mxu0 0.0
  %1565 = vmatpush1.msra.mxu0 0.0
  %1566 = vmatprep.subr.mxu0 0.0
  %1567 = vmatpush1.msra.mxu0 0.0
  %1568 = vmatprep.subr.mxu0 0.0
  %1569 = vmatpush1.msra.mxu0 0.0
  %1570 = vmatprep.subr.mxu0 0.0
  %1571 = vmatpush1.msra.mxu0 0.0
  %1572 = vmatprep.subr.mxu0 0.0
  %1573 = vmatpush1.msra.mxu0 0.0
  %1574 = vmatprep.subr.mxu0 0.0
  %1575 = vmatpush1.msra.mxu0 0.0
  %1576 = vmatprep.subr.mxu0 0.0
  %1577 = vmatpush1.msra.mxu0 0.0
  %1578 = vmatprep.subr.mxu0 0.0
  %1579 = vmatpush1.msra.mxu0 0.0
  %1580 = vmatprep.subr.mxu0 0.0
  %1581 = vmatpush1.msra.mxu0 0.0
  %1582 = vmatprep.mubr.f32.mxu0 0.0
  %1583 = vmatmul.mubr.f32.gmra.mrb[0].mxu0 %v1516
  %v1584 = vpop.f32.mrb[0].mxu0
  %v1585 = vadd.f32 %v1512, %v1584
  %v1586 = vpop.f32.mrb[0].mxu0
  %1587 = vdwg.mxu0
  %s1588 = scalar_lea.vmem %s7, 32
  %v1589 = vld [vmem:[%s1588] sm:$0xff]
  %v1590 = vld [vmem:[%s1588 + $0x8] sm:$0xff]
  %v1592 = vsel %vm1441, %v1434, 0
  %1594 = vmatprep.subr.mxu0 0.0
  %1595 = vmatpush1.msra.mxu0 %v1589
  %1596 = vmatprep.subr.mxu0 0.0
  %1597 = vmatpush1.msra.mxu0 %v1590
  %1598 = vmatprep.subr.mxu0 0.0
  %1599 = vmatpush1.msra.mxu0 0.0
  %1600 = vmatprep.subr.mxu0 0.0
  %1601 = vmatpush1.msra.mxu0 0.0
  %1602 = vmatprep.subr.mxu0 0.0
  %1603 = vmatpush1.msra.mxu0 0.0
  %1604 = vmatprep.subr.mxu0 0.0
  %1605 = vmatpush1.msra.mxu0 0.0
  %1606 = vmatprep.subr.mxu0 0.0
  %1607 = vmatpush1.msra.mxu0 0.0
  %1608 = vmatprep.subr.mxu0 0.0
  %1609 = vmatpush1.msra.mxu0 0.0
  %1610 = vmatprep.subr.mxu0 0.0
  %1611 = vmatpush1.msra.mxu0 0.0
  %1612 = vmatprep.subr.mxu0 0.0
  %1613 = vmatpush1.msra.mxu0 0.0
  %1614 = vmatprep.subr.mxu0 0.0
  %1615 = vmatpush1.msra.mxu0 0.0
  %1616 = vmatprep.subr.mxu0 0.0
  %1617 = vmatpush1.msra.mxu0 0.0
  %1618 = vmatprep.subr.mxu0 0.0
  %1619 = vmatpush1.msra.mxu0 0.0
  %1620 = vmatprep.subr.mxu0 0.0
  %1621 = vmatpush1.msra.mxu0 0.0
  %1622 = vmatprep.subr.mxu0 0.0
  %1623 = vmatpush1.msra.mxu0 0.0
  %1624 = vmatprep.subr.mxu0 0.0
  %1625 = vmatpush1.msra.mxu0 0.0
  %1626 = vmatprep.subr.mxu0 0.0
  %1627 = vmatpush1.msra.mxu0 0.0
  %1628 = vmatprep.subr.mxu0 0.0
  %1629 = vmatpush1.msra.mxu0 0.0
  %1630 = vmatprep.subr.mxu0 0.0
  %1631 = vmatpush1.msra.mxu0 0.0
  %1632 = vmatprep.subr.mxu0 0.0
  %1633 = vmatpush1.msra.mxu0 0.0
  %1634 = vmatprep.subr.mxu0 0.0
  %1635 = vmatpush1.msra.mxu0 0.0
  %1636 = vmatprep.subr.mxu0 0.0
  %1637 = vmatpush1.msra.mxu0 0.0
  %1638 = vmatprep.subr.mxu0 0.0
  %1639 = vmatpush1.msra.mxu0 0.0
  %1640 = vmatprep.subr.mxu0 0.0
  %1641 = vmatpush1.msra.mxu0 0.0
  %1642 = vmatprep.subr.mxu0 0.0
  %1643 = vmatpush1.msra.mxu0 0.0
  %1644 = vmatprep.subr.mxu0 0.0
  %1645 = vmatpush1.msra.mxu0 0.0
  %1646 = vmatprep.subr.mxu0 0.0
  %1647 = vmatpush1.msra.mxu0 0.0
  %1648 = vmatprep.subr.mxu0 0.0
  %1649 = vmatpush1.msra.mxu0 0.0
  %1650 = vmatprep.subr.mxu0 0.0
  %1651 = vmatpush1.msra.mxu0 0.0
  %1652 = vmatprep.subr.mxu0 0.0
  %1653 = vmatpush1.msra.mxu0 0.0
  %1654 = vmatprep.subr.mxu0 0.0
  %1655 = vmatpush1.msra.mxu0 0.0
  %1656 = vmatprep.subr.mxu0 0.0
  %1657 = vmatpush1.msra.mxu0 0.0
  %1658 = vmatprep.mubr.f32.mxu0 0.0
  %1659 = vmatmul.mubr.f32.gmra.mrb[0].mxu0 %v1592
  %v1660 = vpop.f32.mrb[0].mxu0
  %v1661 = vadd.f32 0.0, %v1660
  %v1662 = vpop.f32.mrb[0].mxu0
  %1663 = vdwg.mxu0
  %v1664 = vadd.f32 %v1585, %v1661
  %s1665 = scalar_lea.vmem %s7, 48
  %v1666 = vld [vmem:[%s1665] sm:$0xff]
  %v1667 = vld [vmem:[%s1665 + $0x8] sm:$0xff]
  %v1669 = vsel %vm1441, %v1435, 0
  %1671 = vmatprep.subr.mxu0 0.0
  %1672 = vmatpush1.msra.mxu0 %v1666
  %1673 = vmatprep.subr.mxu0 0.0
  %1674 = vmatpush1.msra.mxu0 %v1667
  %1675 = vmatprep.subr.mxu0 0.0
  %1676 = vmatpush1.msra.mxu0 0.0
  %1677 = vmatprep.subr.mxu0 0.0
  %1678 = vmatpush1.msra.mxu0 0.0
  %1679 = vmatprep.subr.mxu0 0.0
  %1680 = vmatpush1.msra.mxu0 0.0
  %1681 = vmatprep.subr.mxu0 0.0
  %1682 = vmatpush1.msra.mxu0 0.0
  %1683 = vmatprep.subr.mxu0 0.0
  %1684 = vmatpush1.msra.mxu0 0.0
  %1685 = vmatprep.subr.mxu0 0.0
  %1686 = vmatpush1.msra.mxu0 0.0
  %1687 = vmatprep.subr.mxu0 0.0
  %1688 = vmatpush1.msra.mxu0 0.0
  %1689 = vmatprep.subr.mxu0 0.0
  %1690 = vmatpush1.msra.mxu0 0.0
  %1691 = vmatprep.subr.mxu0 0.0
  %1692 = vmatpush1.msra.mxu0 0.0
  %1693 = vmatprep.subr.mxu0 0.0
  %1694 = vmatpush1.msra.mxu0 0.0
  %1695 = vmatprep.subr.mxu0 0.0
  %1696 = vmatpush1.msra.mxu0 0.0
  %1697 = vmatprep.subr.mxu0 0.0
  %1698 = vmatpush1.msra.mxu0 0.0
  %1699 = vmatprep.subr.mxu0 0.0
  %1700 = vmatpush1.msra.mxu0 0.0
  %1701 = vmatprep.subr.mxu0 0.0
  %1702 = vmatpush1.msra.mxu0 0.0
  %1703 = vmatprep.subr.mxu0 0.0
  %1704 = vmatpush1.msra.mxu0 0.0
  %1705 = vmatprep.subr.mxu0 0.0
  %1706 = vmatpush1.msra.mxu0 0.0
  %1707 = vmatprep.subr.mxu0 0.0
  %1708 = vmatpush1.msra.mxu0 0.0
  %1709 = vmatprep.subr.mxu0 0.0
  %1710 = vmatpush1.msra.mxu0 0.0
  %1711 = vmatprep.subr.mxu0 0.0
  %1712 = vmatpush1.msra.mxu0 0.0
  %1713 = vmatprep.subr.mxu0 0.0
  %1714 = vmatpush1.msra.mxu0 0.0
  %1715 = vmatprep.subr.mxu0 0.0
  %1716 = vmatpush1.msra.mxu0 0.0
  %1717 = vmatprep.subr.mxu0 0.0
  %1718 = vmatpush1.msra.mxu0 0.0
  %1719 = vmatprep.subr.mxu0 0.0
  %1720 = vmatpush1.msra.mxu0 0.0
  %1721 = vmatprep.subr.mxu0 0.0
  %1722 = vmatpush1.msra.mxu0 0.0
  %1723 = vmatprep.subr.mxu0 0.0
  %1724 = vmatpush1.msra.mxu0 0.0
  %1725 = vmatprep.subr.mxu0 0.0
  %1726 = vmatpush1.msra.mxu0 0.0
  %1727 = vmatprep.subr.mxu0 0.0
  %1728 = vmatpush1.msra.mxu0 0.0
  %1729 = vmatprep.subr.mxu0 0.0
  %1730 = vmatpush1.msra.mxu0 0.0
  %1731 = vmatprep.subr.mxu0 0.0
  %1732 = vmatpush1.msra.mxu0 0.0
  %1733 = vmatprep.subr.mxu0 0.0
  %1734 = vmatpush1.msra.mxu0 0.0
  %1735 = vmatprep.mubr.f32.mxu0 0.0
  %1736 = vmatmul.mubr.f32.gmra.mrb[0].mxu0 %v1669
  %v1737 = vpop.f32.mrb[0].mxu0
  %v1738 = vadd.f32 0.0, %v1737
  %v1739 = vpop.f32.mrb[0].mxu0
  %1740 = vdwg.mxu0
  %v1741 = vadd.f32 %v1664, %v1738
  %v1742 = vld [vmem:[%s8] sm:$0x1]
  %v1744 = vlaneseq
  %v1745 = vshrl.u32 %v1744, 7
  %v1746 = vsub.s32 0, %v1745
  %v1747 = vrot.slane %v1742, %v1746
  %v1749 = vadd.f32 %v1741, %v1747
  %vm1750 = vcmask 80896
  %1751 = vst.msk [vmem:[%s9] sm:$0xff] %vm1750, %v1749
  // Predicated region
  $region38: #{simple_cnn_forward.1} parent=0 // pred_check
    _
  $region39: #{simple_cnn_forward.1} parent=0 // pred_check_branch
    %1753 = sbr.rel (0) target = $region41
  $region40: #{simple_cnn_forward.1} parent=0 // pred_region
    _
  $region41: #{simple_cnn_forward.1} parent=0 // pred_fallthru
    _
  // Predicated region
  $region42: #{simple_cnn_forward.1} parent=0 // pred_check
    _
  $region43: #{simple_cnn_forward.1} parent=0 // pred_check_branch
    %1755 = sbr.rel (0) target = $region45
  $region44: #{simple_cnn_forward.1} parent=0 // pred_region
    _
  $region45: #{simple_cnn_forward.1} parent=0 // pred_fallthru
    _

</llo_original>
